<compile_context>
chip_gen: v7x
topology: tpu7x:2x2x1
jax: 0.10.0
libtpu: 0.0.40
codegen_flags: <defaults>
</compile_context>

<pallas_src>
import math

import jax
import jax.numpy as jnp
from jax import lax
from jax.experimental import pallas as pl
from jax.experimental.pallas import tpu as pltpu

# MXU input dtype (bf16-native on v5e/v6e/v7x).  Accumulation is always f32 via
# preferred_element_type; softmax / LayerNorm statistics stay f32.
MM_DTYPE = jnp.bfloat16


def _layernorm(t, g, b, eps=1e-5):
    mu = jnp.mean(t, axis=-1, keepdims=True)
    var = jnp.mean((t - mu) ** 2, axis=-1, keepdims=True)
    return (t - mu) * lax.rsqrt(var + eps) * g + b


def _autoencoder_kernel(
    x_ref,        # (L, E)        f32
    wqkvT_ref,    # (E, H*3E)     bf16: per head [Wq^T/sqrt(E) | Wk^T | Wv^T]
    bqkv_ref,     # (1, H*3E)     f32 (bq already scaled by 1/sqrt(E))
    wzT_ref,      # (H*E, E)      bf16: Wz^T
    bz_ref,       # (1, E)        f32
    g1_ref, b1_ref,   # (1, E)    f32
    wfT_ref,      # (E, E)        bf16: Wf^T
    bf_ref,       # (1, E)        f32
    g2_ref, b2_ref,   # (1, E)    f32
    out_ref,      # (L, E)
):
    L, E = x_ref.shape
    H = wqkvT_ref.shape[1] // (3 * E)
    mm = MM_DTYPE

    x = x_ref[...]                       # f32 activations
    x_mm = x.astype(mm)

    # All heads' Q/K/V in a single (L,E) x (E, H*3E) bf16 matmul, f32 accumulate.
    qkv = jnp.dot(x_mm, wqkvT_ref[...],
                  preferred_element_type=jnp.float32) + bqkv_ref[...]

    # O = Z @ Wz^T accumulated head-by-head (Z = concat of per-head outputs).
    acc = jnp.zeros((L, E), jnp.float32)

    for h in range(H):                   # static unroll; H is small
        base = 3 * E * h
        q = qkv[:, base:base + E]        # already scaled by 1/sqrt(E) (folded)
        k = qkv[:, base + E:base + 2 * E]
        v = qkv[:, base + 2 * E:base + 3 * E]

        # Scores in transposed orientation: t = (K^T Q)^T = Q^T K, so the softmax
        # statistics (over the PyTorch dim=1 axis) are axis-0 reductions that land
        # as (1, E) vregs -> the 1/denominator folds straight into V's columns.
        t = lax.dot_general(q.astype(mm), k.astype(mm),
                            (((0,), (0,)), ((), ())),
                            preferred_element_type=jnp.float32)       # (E, E)
        t = t - jnp.max(t, axis=0, keepdims=True)
        p_t = jnp.exp(t)                                              # = P^T
        r = pl.reciprocal(jnp.sum(p_t, axis=0, keepdims=True),
                          approx=True)                                # (1, E)
        v_scaled = v * r                                              # (L, E) VPU mul

        # head = (V * r) @ P  ==  contract the shared axis of v_scaled and P^T.
        head = lax.dot_general(v_scaled.astype(mm), p_t.astype(mm),
                               (((1,), (1,)), ((), ())),
                               preferred_element_type=jnp.float32)    # (L, E)

        acc = acc + jnp.dot(head.astype(mm), wzT_ref[h * E:(h + 1) * E, :],
                            preferred_element_type=jnp.float32)

    # Epilogue: bias, LN1 + residual, Wf, LN2 + residual (all stats in f32).
    o = acc + bz_ref[...]
    ln1 = _layernorm(o, g1_ref[...], b1_ref[...]) + x
    fn = jnp.dot(ln1.astype(mm), wfT_ref[...],
                 preferred_element_type=jnp.float32) + bf_ref[...]
    ln2 = _layernorm(fn, g2_ref[...], b2_ref[...]) + ln1

    out_ref[...] = ln2.astype(out_ref.dtype)


def autoencoder_layer(x, params):
    L, E = x.shape
    # No grid: at the test shapes everything (bf16 weights ~0.3 MiB + activations)
    # is VMEM-resident and the head loop is statically unrolled in one invocation.
    # TODO(synk): for production shapes (emb=1024, heads=8) the resident bf16
    #   weights (~66 MiB) exceed v7x's 64 MiB VMEM: switch to a head-axis grid with
    #   (1,E,3E)/(1,E,E) weight BlockSpecs (double/triple buffered), an f32 (L,E)
    #   scratch accumulator with pl.when init/finalize, and — on v7x — per-core
    #   partial accumulators + a cross-core reduce instead of a naive "parallel"
    #   head axis (it is a reduction).  On v6e/v5e raise vmem_limit_bytes instead.
    # TODO(synk): if the real workload has many sequences, batch them into the row
    #   dimension (M = B*L) at the wrapper to raise MXU utilization.
    vmem = lambda: pl.BlockSpec(memory_space=pltpu.MemorySpace.VMEM)
    return pl.pallas_call(
        _autoencoder_kernel,
        out_shape=jax.ShapeDtypeStruct((L, E), x.dtype),
        in_specs=[vmem() for _ in range(11)],
        out_specs=vmem(),
        compiler_params=pltpu.CompilerParams(
            vmem_limit_bytes=32 * 1024 * 1024),
    )(x, params["wqkvT"], params["bqkv"], params["wzT"], params["bz"],
      params["g1"], params["b1"], params["wfT"], params["bf"],
      params["g2"], params["b2"])


def init_params(key, emb, heads, mm_dtype=MM_DTYPE):
    """Returns (kernel params: packed/folded/bf16, reference params: plain f32)."""
    E, H = emb, heads
    keys = jax.random.split(key, 10)
    k_lin = 1.0 / math.sqrt(E)
    k_z = 1.0 / math.sqrt(E * H)
    u = lambda k, shape, b: jax.random.uniform(k, shape, jnp.float32, -b, b)

    wq = u(keys[0], (H, E, E), k_lin)   # nn.Linear.weight layout: (out, in)
    bq = u(keys[1], (H, E), k_lin)
    wk = u(keys[2], (H, E, E), k_lin)
    bk = u(keys[3], (H, E), k_lin)
    wv = u(keys[4], (H, E, E), k_lin)
    bv = u(keys[5], (H, E), k_lin)
    wz = u(keys[6], (E, H * E), k_z)
    bz = u(keys[7], (E,), k_z)
    wf = u(keys[8], (E, E), k_lin)
    bf = u(keys[9], (E,), k_lin)

    ref_params = dict(wq=wq, bq=bq, wk=wk, bk=bk, wv=wv, bv=bv,
                      wz=wz, bz=bz, wf=wf, bf=bf)

    # Fold the 1/sqrt(E) attention scale into Wq / bq (one-time transform).
    scale = 1.0 / math.sqrt(E)
    wqs, bqs = wq * scale, bq * scale

    # Pack all heads' pre-transposed Q/K/V weights into one (E, H*3E) bf16 tensor.
    wqkvT = jnp.concatenate(
        [jnp.concatenate([wqs[h].T, wk[h].T, wv[h].T], axis=1) for h in range(H)],
        axis=1).astype(mm_dtype)
    bqkv = jnp.concatenate(
        [jnp.concatenate([bqs[h], bk[h], bv[h]]) for h in range(H)]
    ).reshape(1, H * 3 * E)                                  # bias stays f32

    params = dict(
        wqkvT=wqkvT, bqkv=bqkv,
        wzT=wz.T.astype(mm_dtype),                           # (H*E, E)
        bz=bz.reshape(1, E),
        g1=jnp.ones((1, E), jnp.float32), b1=jnp.zeros((1, E), jnp.float32),
        wfT=wf.T.astype(mm_dtype), bf=bf.reshape(1, E),
        g2=jnp.ones((1, E), jnp.float32), b2=jnp.zeros((1, E), jnp.float32),
    )
    return params, ref_params


def reference(x, rp):
    """Independent literal JAX port of AutoEncoderLayer.forward, f32 / HIGHEST."""
    E = x.shape[1]
    H = rp["wq"].shape[0]
    hi = jax.lax.Precision.HIGHEST
    dot = lambda a, b: jnp.dot(a, b, precision=hi)

    heads = []
    for h in range(H):
        q = dot(x, rp["wq"][h].T) + rp["bq"][h]
        k = dot(x, rp["wk"][h].T) + rp["bk"][h]
        v = dot(x, rp["wv"][h].T) + rp["bv"][h]
        a = jax.nn.softmax(dot(k.T, q) / math.sqrt(E), axis=1)
        heads.append(dot(v, a))
    z = jnp.concatenate(heads, axis=1)
    o = dot(z, rp["wz"].T) + rp["bz"]

    def ln(t):
        mu = t.mean(-1, keepdims=True)
        var = ((t - mu) ** 2).mean(-1, keepdims=True)
        return (t - mu) / jnp.sqrt(var + 1e-5)

    ln1 = ln(o) + x
    fn = dot(ln1, rp["wf"].T) + rp["bf"]
    return ln(fn) + ln1


if __name__ == "__main__":
    L, E, H = 8, 128, 2          # small shapes: max_length=8, emb=128, heads=2
    key = jax.random.PRNGKey(0)
    kx, kp = jax.random.split(key)
    x = jax.random.normal(kx, (L, E), jnp.float32)
    params, ref_params = init_params(kp, E, H)

    out = jax.block_until_ready(autoencoder_layer(x, params))
    ref = jax.block_until_ready(reference(x, ref_params))

    assert out.shape == (L, E) and out.dtype == jnp.float32

    # Kernel runs bf16 MXU inputs (f32 accumulate) + EUP approx reciprocal, the
    # reference is exact f32 — expect ~1e-2-level elementwise deviation after two
    # LayerNorms.  The relative Frobenius check is the tight structural test.
    err = out - ref
    rel_fro = float(jnp.linalg.norm(err) / jnp.linalg.norm(ref))
    max_abs = float(jnp.max(jnp.abs(err)))
    assert rel_fro < 2e-2, f"structural mismatch vs reference (rel Frobenius {rel_fro:.3e})"
    assert jnp.allclose(out, ref, rtol=5e-2, atol=5e-2), (
        f"mismatch vs reference (max abs err {max_abs:.3e})")
    print("KERNEL_OK")
</pallas_src>

<mosaic_0001>
module attributes {stable_mosaic.version = 11 : i64} {
  func.func @_autoencoder_kernel(%arg0: memref<8x128xf32, #tpu.memory_space<vmem>>, %arg1: memref<128x768xbf16, #tpu.memory_space<vmem>>, %arg2: memref<1x768xf32, #tpu.memory_space<vmem>>, %arg3: memref<256x128xbf16, #tpu.memory_space<vmem>>, %arg4: memref<1x128xf32, #tpu.memory_space<vmem>>, %arg5: memref<1x128xf32, #tpu.memory_space<vmem>>, %arg6: memref<1x128xf32, #tpu.memory_space<vmem>>, %arg7: memref<128x128xbf16, #tpu.memory_space<vmem>>, %arg8: memref<1x128xf32, #tpu.memory_space<vmem>>, %arg9: memref<1x128xf32, #tpu.memory_space<vmem>>, %arg10: memref<1x128xf32, #tpu.memory_space<vmem>>, %arg11: memref<8x128xf32, #tpu.memory_space<vmem>>) attributes {dimension_semantics = [], scalar_prefetch = 0 : i64, scratch_operands = 0 : i64, tpu.core_type = #tpu.core_type<tc>} {
    %c0 = arith.constant 0 : index
    %c0_0 = arith.constant 0 : index
    %0 = vector.load %arg0[%c0, %c0_0] : memref<8x128xf32, #tpu.memory_space<vmem>>, vector<8x128xf32>
    %1 = arith.truncf %0 : vector<8x128xf32> to vector<8x128xbf16>
    %c0_1 = arith.constant 0 : index
    %c0_2 = arith.constant 0 : index
    %2 = vector.load %arg1[%c0_1, %c0_2] : memref<128x768xbf16, #tpu.memory_space<vmem>>, vector<128x768xbf16>
    %cst = arith.constant dense<0.000000e+00> : vector<8x768xf32>
    %3 = tpu.matmul %1, %2, %cst {dimension_numbers = #tpu.dot_dimension_numbers<[1], [0], [0], [1], [0, 0, 1, 1], [], []>} : vector<8x128xbf16>, vector<128x768xbf16>, vector<8x768xf32> -> vector<8x768xf32>
    %c0_3 = arith.constant 0 : index
    %c0_4 = arith.constant 0 : index
    %4 = vector.load %arg2[%c0_3, %c0_4] : memref<1x768xf32, #tpu.memory_space<vmem>>, vector<1x768xf32>
    %5 = vector.broadcast %4 : vector<1x768xf32> to vector<8x768xf32>
    %6 = arith.addf %3, %5 : vector<8x768xf32>
    %cst_5 = arith.constant 0.000000e+00 : f32
    %7 = vector.broadcast %cst_5 : f32 to vector<8x128xf32>
    %8 = vector.extract_strided_slice %6 {offsets = [0, 0], sizes = [8, 128], strides = [1, 1]} : vector<8x768xf32> to vector<8x128xf32>
    %9 = vector.extract_strided_slice %6 {offsets = [0, 128], sizes = [8, 128], strides = [1, 1]} : vector<8x768xf32> to vector<8x128xf32>
    %10 = vector.extract_strided_slice %6 {offsets = [0, 256], sizes = [8, 128], strides = [1, 1]} : vector<8x768xf32> to vector<8x128xf32>
    %11 = arith.truncf %8 : vector<8x128xf32> to vector<8x128xbf16>
    %12 = arith.truncf %9 : vector<8x128xf32> to vector<8x128xbf16>
    %cst_6 = arith.constant dense<0.000000e+00> : vector<128x128xf32>
    %13 = tpu.matmul %11, %12, %cst_6 {dimension_numbers = #tpu.dot_dimension_numbers<[0], [0], [1], [1], [0, 1, 1, 1], [], []>} : vector<8x128xbf16>, vector<8x128xbf16>, vector<128x128xf32> -> vector<128x128xf32>
    %cst_7 = arith.constant dense<0xFF800000> : vector<128xf32>
    %14 = vector.multi_reduction <maximumf>, %13, %cst_7 [0] : vector<128x128xf32> to vector<128xf32>
    %15 = vector.shape_cast %14 : vector<128xf32> to vector<1x128xf32>
    %16 = vector.broadcast %15 : vector<1x128xf32> to vector<128x128xf32>
    %17 = arith.subf %13, %16 : vector<128x128xf32>
    %18 = math.exp %17 : vector<128x128xf32>
    %cst_8 = arith.constant dense<0.000000e+00> : vector<128xf32>
    %19 = vector.multi_reduction <add>, %18, %cst_8 [0] : vector<128x128xf32> to vector<128xf32>
    %20 = vector.shape_cast %19 : vector<128xf32> to vector<1x128xf32>
    %21 = tpu.reciprocal %20 {approx = true} : vector<1x128xf32> -> vector<1x128xf32>
    %22 = vector.broadcast %21 : vector<1x128xf32> to vector<8x128xf32>
    %23 = arith.mulf %10, %22 : vector<8x128xf32>
    %24 = arith.truncf %23 : vector<8x128xf32> to vector<8x128xbf16>
    %25 = arith.truncf %18 : vector<128x128xf32> to vector<128x128xbf16>
    %cst_9 = arith.constant dense<0.000000e+00> : vector<8x128xf32>
    %26 = tpu.matmul %24, %25, %cst_9 {dimension_numbers = #tpu.dot_dimension_numbers<[1], [1], [0], [0], [0, 0, 1, 0], [], []>} : vector<8x128xbf16>, vector<128x128xbf16>, vector<8x128xf32> -> vector<8x128xf32>
    %27 = arith.truncf %26 : vector<8x128xf32> to vector<8x128xbf16>
    %c0_10 = arith.constant 0 : index
    %c0_11 = arith.constant 0 : index
    %28 = vector.load %arg3[%c0_10, %c0_11] : memref<256x128xbf16, #tpu.memory_space<vmem>>, vector<128x128xbf16>
    %cst_12 = arith.constant dense<0.000000e+00> : vector<8x128xf32>
    %29 = tpu.matmul %27, %28, %cst_12 {dimension_numbers = #tpu.dot_dimension_numbers<[1], [0], [0], [1], [0, 0, 1, 1], [], []>} : vector<8x128xbf16>, vector<128x128xbf16>, vector<8x128xf32> -> vector<8x128xf32>
    %30 = arith.addf %7, %29 : vector<8x128xf32>
    %31 = vector.extract_strided_slice %6 {offsets = [0, 384], sizes = [8, 128], strides = [1, 1]} : vector<8x768xf32> to vector<8x128xf32>
    %32 = vector.extract_strided_slice %6 {offsets = [0, 512], sizes = [8, 128], strides = [1, 1]} : vector<8x768xf32> to vector<8x128xf32>
    %33 = vector.extract_strided_slice %6 {offsets = [0, 640], sizes = [8, 128], strides = [1, 1]} : vector<8x768xf32> to vector<8x128xf32>
    %34 = arith.truncf %31 : vector<8x128xf32> to vector<8x128xbf16>
    %35 = arith.truncf %32 : vector<8x128xf32> to vector<8x128xbf16>
    %cst_13 = arith.constant dense<0.000000e+00> : vector<128x128xf32>
    %36 = tpu.matmul %34, %35, %cst_13 {dimension_numbers = #tpu.dot_dimension_numbers<[0], [0], [1], [1], [0, 1, 1, 1], [], []>} : vector<8x128xbf16>, vector<8x128xbf16>, vector<128x128xf32> -> vector<128x128xf32>
    %cst_14 = arith.constant dense<0xFF800000> : vector<128xf32>
    %37 = vector.multi_reduction <maximumf>, %36, %cst_14 [0] : vector<128x128xf32> to vector<128xf32>
    %38 = vector.shape_cast %37 : vector<128xf32> to vector<1x128xf32>
    %39 = vector.broadcast %38 : vector<1x128xf32> to vector<128x128xf32>
    %40 = arith.subf %36, %39 : vector<128x128xf32>
    %41 = math.exp %40 : vector<128x128xf32>
    %cst_15 = arith.constant dense<0.000000e+00> : vector<128xf32>
    %42 = vector.multi_reduction <add>, %41, %cst_15 [0] : vector<128x128xf32> to vector<128xf32>
    %43 = vector.shape_cast %42 : vector<128xf32> to vector<1x128xf32>
    %44 = tpu.reciprocal %43 {approx = true} : vector<1x128xf32> -> vector<1x128xf32>
    %45 = vector.broadcast %44 : vector<1x128xf32> to vector<8x128xf32>
    %46 = arith.mulf %33, %45 : vector<8x128xf32>
    %47 = arith.truncf %46 : vector<8x128xf32> to vector<8x128xbf16>
    %48 = arith.truncf %41 : vector<128x128xf32> to vector<128x128xbf16>
    %cst_16 = arith.constant dense<0.000000e+00> : vector<8x128xf32>
    %49 = tpu.matmul %47, %48, %cst_16 {dimension_numbers = #tpu.dot_dimension_numbers<[1], [1], [0], [0], [0, 0, 1, 0], [], []>} : vector<8x128xbf16>, vector<128x128xbf16>, vector<8x128xf32> -> vector<8x128xf32>
    %50 = arith.truncf %49 : vector<8x128xf32> to vector<8x128xbf16>
    %c128 = arith.constant 128 : index
    %c0_17 = arith.constant 0 : index
    %51 = vector.load %arg3[%c128, %c0_17] : memref<256x128xbf16, #tpu.memory_space<vmem>>, vector<128x128xbf16>
    %cst_18 = arith.constant dense<0.000000e+00> : vector<8x128xf32>
    %52 = tpu.matmul %50, %51, %cst_18 {dimension_numbers = #tpu.dot_dimension_numbers<[1], [0], [0], [1], [0, 0, 1, 1], [], []>} : vector<8x128xbf16>, vector<128x128xbf16>, vector<8x128xf32> -> vector<8x128xf32>
    %53 = arith.addf %30, %52 : vector<8x128xf32>
    %c0_19 = arith.constant 0 : index
    %c0_20 = arith.constant 0 : index
    %54 = vector.load %arg4[%c0_19, %c0_20] : memref<1x128xf32, #tpu.memory_space<vmem>>, vector<1x128xf32>
    %55 = vector.broadcast %54 : vector<1x128xf32> to vector<8x128xf32>
    %56 = arith.addf %53, %55 : vector<8x128xf32>
    %c0_21 = arith.constant 0 : index
    %c0_22 = arith.constant 0 : index
    %57 = vector.load %arg5[%c0_21, %c0_22] : memref<1x128xf32, #tpu.memory_space<vmem>>, vector<1x128xf32>
    %c0_23 = arith.constant 0 : index
    %c0_24 = arith.constant 0 : index
    %58 = vector.load %arg6[%c0_23, %c0_24] : memref<1x128xf32, #tpu.memory_space<vmem>>, vector<1x128xf32>
    %cst_25 = arith.constant dense<0.000000e+00> : vector<8xf32>
    %59 = vector.multi_reduction <add>, %56, %cst_25 [1] : vector<8x128xf32> to vector<8xf32>
    %60 = vector.shape_cast %59 : vector<8xf32> to vector<8x1xf32>
    %cst_26 = arith.constant 1.280000e+02 : f32
    %61 = vector.broadcast %cst_26 : f32 to vector<8x1xf32>
    %62 = arith.divf %60, %61 : vector<8x1xf32>
    %63 = vector.broadcast %62 : vector<8x1xf32> to vector<8x128xf32>
    %64 = arith.subf %56, %63 : vector<8x128xf32>
    %65 = arith.mulf %64, %64 : vector<8x128xf32>
    %cst_27 = arith.constant dense<0.000000e+00> : vector<8xf32>
    %66 = vector.multi_reduction <add>, %65, %cst_27 [1] : vector<8x128xf32> to vector<8xf32>
    %67 = vector.shape_cast %66 : vector<8xf32> to vector<8x1xf32>
    %cst_28 = arith.constant 1.280000e+02 : f32
    %68 = vector.broadcast %cst_28 : f32 to vector<8x1xf32>
    %69 = arith.divf %67, %68 : vector<8x1xf32>
    %70 = vector.broadcast %62 : vector<8x1xf32> to vector<8x128xf32>
    %71 = arith.subf %56, %70 : vector<8x128xf32>
    %cst_29 = arith.constant 9.99999974E-6 : f32
    %72 = vector.broadcast %cst_29 : f32 to vector<8x1xf32>
    %73 = arith.addf %69, %72 : vector<8x1xf32>
    %74 = math.rsqrt %73 : vector<8x1xf32>
    %75 = vector.broadcast %74 : vector<8x1xf32> to vector<8x128xf32>
    %76 = arith.mulf %71, %75 : vector<8x128xf32>
    %77 = vector.broadcast %57 : vector<1x128xf32> to vector<8x128xf32>
    %78 = arith.mulf %76, %77 : vector<8x128xf32>
    %79 = vector.broadcast %58 : vector<1x128xf32> to vector<8x128xf32>
    %80 = arith.addf %78, %79 : vector<8x128xf32>
    %81 = arith.addf %80, %0 : vector<8x128xf32>
    %82 = arith.truncf %81 : vector<8x128xf32> to vector<8x128xbf16>
    %c0_30 = arith.constant 0 : index
    %c0_31 = arith.constant 0 : index
    %83 = vector.load %arg7[%c0_30, %c0_31] : memref<128x128xbf16, #tpu.memory_space<vmem>>, vector<128x128xbf16>
    %cst_32 = arith.constant dense<0.000000e+00> : vector<8x128xf32>
    %84 = tpu.matmul %82, %83, %cst_32 {dimension_numbers = #tpu.dot_dimension_numbers<[1], [0], [0], [1], [0, 0, 1, 1], [], []>} : vector<8x128xbf16>, vector<128x128xbf16>, vector<8x128xf32> -> vector<8x128xf32>
    %c0_33 = arith.constant 0 : index
    %c0_34 = arith.constant 0 : index
    %85 = vector.load %arg8[%c0_33, %c0_34] : memref<1x128xf32, #tpu.memory_space<vmem>>, vector<1x128xf32>
    %86 = vector.broadcast %85 : vector<1x128xf32> to vector<8x128xf32>
    %87 = arith.addf %84, %86 : vector<8x128xf32>
    %c0_35 = arith.constant 0 : index
    %c0_36 = arith.constant 0 : index
    %88 = vector.load %arg9[%c0_35, %c0_36] : memref<1x128xf32, #tpu.memory_space<vmem>>, vector<1x128xf32>
    %c0_37 = arith.constant 0 : index
    %c0_38 = arith.constant 0 : index
    %89 = vector.load %arg10[%c0_37, %c0_38] : memref<1x128xf32, #tpu.memory_space<vmem>>, vector<1x128xf32>
    %cst_39 = arith.constant dense<0.000000e+00> : vector<8xf32>
    %90 = vector.multi_reduction <add>, %87, %cst_39 [1] : vector<8x128xf32> to vector<8xf32>
    %91 = vector.shape_cast %90 : vector<8xf32> to vector<8x1xf32>
    %cst_40 = arith.constant 1.280000e+02 : f32
    %92 = vector.broadcast %cst_40 : f32 to vector<8x1xf32>
    %93 = arith.divf %91, %92 : vector<8x1xf32>
    %94 = vector.broadcast %93 : vector<8x1xf32> to vector<8x128xf32>
    %95 = arith.subf %87, %94 : vector<8x128xf32>
    %96 = arith.mulf %95, %95 : vector<8x128xf32>
    %cst_41 = arith.constant dense<0.000000e+00> : vector<8xf32>
    %97 = vector.multi_reduction <add>, %96, %cst_41 [1] : vector<8x128xf32> to vector<8xf32>
    %98 = vector.shape_cast %97 : vector<8xf32> to vector<8x1xf32>
    %cst_42 = arith.constant 1.280000e+02 : f32
    %99 = vector.broadcast %cst_42 : f32 to vector<8x1xf32>
    %100 = arith.divf %98, %99 : vector<8x1xf32>
    %101 = vector.broadcast %93 : vector<8x1xf32> to vector<8x128xf32>
    %102 = arith.subf %87, %101 : vector<8x128xf32>
    %cst_43 = arith.constant 9.99999974E-6 : f32
    %103 = vector.broadcast %cst_43 : f32 to vector<8x1xf32>
    %104 = arith.addf %100, %103 : vector<8x1xf32>
    %105 = math.rsqrt %104 : vector<8x1xf32>
    %106 = vector.broadcast %105 : vector<8x1xf32> to vector<8x128xf32>
    %107 = arith.mulf %102, %106 : vector<8x128xf32>
    %108 = vector.broadcast %88 : vector<1x128xf32> to vector<8x128xf32>
    %109 = arith.mulf %107, %108 : vector<8x128xf32>
    %110 = vector.broadcast %89 : vector<1x128xf32> to vector<8x128xf32>
    %111 = arith.addf %109, %110 : vector<8x128xf32>
    %112 = arith.addf %111, %81 : vector<8x128xf32>
    %c0_44 = arith.constant 0 : index
    %c0_45 = arith.constant 0 : index
    %113 = vector.load %arg11[%c0_44, %c0_45] : memref<8x128xf32, #tpu.memory_space<vmem>>, vector<8x128xf32>
    tpu.vector_store %arg11[%c0_44, %c0_45], %112 {strides = array<i32>} : memref<8x128xf32, #tpu.memory_space<vmem>>, vector<8x128xf32>,
    return
  }
}

</mosaic_0001>

<llo_original>
// kernel: tpu_custom_call.1
$region0: #{tpu_custom_call.1}
  #allocation0 [shape = 'u32[]', space=smem, size = 0x4, offset = 0x4, fixed_abs, tag = 'smem constant byte address 0x4 - core index']
  #allocation1 [shape = 'u32[144,128]{1,0:T(1,128)}', space=vmem, size = 0x12000, scoped, tag = 'internal scratch']
  %s0 = inlined_call_operand.hbm [shape: f32[8,128], index: 0, kind: input, shape index: {}]
  %s1 = inlined_call_operand.hbm [shape: bf16[128,768], index: 1, kind: input, shape index: {}]
  %s2 = inlined_call_operand.vmem [shape: f32[1,768], index: 2, kind: input, shape index: {}]
  %s3 = inlined_call_operand.hbm [shape: bf16[256,128], index: 3, kind: input, shape index: {}]
  %s4 = inlined_call_operand.vmem [shape: f32[1,128], index: 4, kind: input, shape index: {}]
  %s5 = inlined_call_operand.vmem [shape: f32[1,128], index: 5, kind: input, shape index: {}]
  %s6 = inlined_call_operand.vmem [shape: f32[1,128], index: 6, kind: input, shape index: {}]
  %s7 = inlined_call_operand.hbm [shape: bf16[128,128], index: 7, kind: input, shape index: {}]
  %s8 = inlined_call_operand.vmem [shape: f32[1,128], index: 8, kind: input, shape index: {}]
  %s9 = inlined_call_operand.vmem [shape: f32[1,128], index: 9, kind: input, shape index: {}]
  %s10 = inlined_call_operand.vmem [shape: f32[1,128], index: 10, kind: input, shape index: {}]
  %s11 = inlined_call_operand.hbm [shape: f32[8,128], index: 11, kind: output, shape index: {}]
  %s12 = sld [smem:[#allocation0]]
  $region70: #{tpu_custom_call.1} parent=0
    _
  %s14 = ssub.s32 1, %s12
  %s15 = scalar_select 0, %s14, %s12
  $region1: #{tpu_custom_call.1} parent=0
    #allocation2 [shape = 'u8[4096]{0}', space=vmem, size = 0x1000, scoped, tag = 'input window, operand 0, single buffered']
    #allocation3 [shape = 's32[1]{0}', space=sflag, size = 0x4, scoped, tag = 'scoped memory for tpu_custom_call.1']
    #allocation4 [shape = 's32[1]{0}', space=sflag, size = 0x4, scoped, tag = 'scoped memory for tpu_custom_call.1']
    #allocation5 [shape = 'u8[196608]{0}', space=vmem, size = 0x30000, scoped, tag = 'input window, operand 1, single buffered']
    #allocation6 [shape = 's32[1]{0}', space=sflag, size = 0x4, scoped, tag = 'scoped memory for tpu_custom_call.1']
    #allocation7 [shape = 'u8[65536]{0}', space=vmem, size = 0x10000, scoped, tag = 'input window, operand 3, single buffered']
    #allocation8 [shape = 'u8[32768]{0}', space=vmem, size = 0x8000, scoped, tag = 'input window, operand 7, single buffered']
    #allocation9 [shape = 's32[1]{0}', space=sflag, size = 0x4, scoped, tag = 'scoped memory for tpu_custom_call.1']
    #allocation10 [shape = 'u8[4096]{0}', space=vmem, size = 0x1000, scoped, tag = 'output window, operand 0, single buffered']
    %16 = vsyncpa [#allocation3], 0
    %17 = vsyncpa [#allocation6], 0
    %18 = vsyncpa [#allocation9], 0
    %19 = vsyncpa [#allocation4], 0
    // Predicated region
    $region2: #{tpu_custom_call.1} parent=1 // pred_check
      _
    $region3: #{tpu_custom_call.1} parent=1 // pred_check_branch
      %21 = sbr.rel (0) target = $region5
    $region4: #{tpu_custom_call.1} parent=1 // pred_region
      %s23 = ssub.s32 128, 128
      %24 = vsyncadd [#allocation3], %s23
      %s26 = sshll.u32 [#allocation2], 4
      %s27 = int_to_ptr.vmem [resolvable:$true] %s26
      %29 = dma.hbm_to_vmem [thread:$0]  %s0, 128, %s27, [#allocation3]
    $region5: #{tpu_custom_call.1} parent=1 // pred_fallthru
      _
    // Predicated region
    $region6: #{tpu_custom_call.1} parent=1 // pred_check
      _
    $region7: #{tpu_custom_call.1} parent=1 // pred_check_branch
      %31 = sbr.rel (0) target = $region9
    $region8: #{tpu_custom_call.1} parent=1 // pred_region
      %s33 = ssub.s32 6144, 6144
      %34 = vsyncadd [#allocation6], %s33
      %s35 = sshll.u32 [#allocation5], 4
      %s36 = int_to_ptr.vmem [resolvable:$true] %s35
      %41 = dma.hbm_to_vmem [thread:$0]  %s1, 6144, %s36, [#allocation6], 384, 384, 24
    $region9: #{tpu_custom_call.1} parent=1 // pred_fallthru
      _
    // Predicated region
    $region10: #{tpu_custom_call.1} parent=1 // pred_check
      _
    $region11: #{tpu_custom_call.1} parent=1 // pred_check_branch
      %43 = sbr.rel (0) target = $region13
    $region12: #{tpu_custom_call.1} parent=1 // pred_region
      _
    $region13: #{tpu_custom_call.1} parent=1 // pred_fallthru
      _
    // Predicated region
    $region14: #{tpu_custom_call.1} parent=1 // pred_check
      _
    $region15: #{tpu_custom_call.1} parent=1 // pred_check_branch
      %45 = sbr.rel (0) target = $region17
    $region16: #{tpu_custom_call.1} parent=1 // pred_region
      %s47 = ssub.s32 2048, 2048
      %48 = vsyncadd [#allocation6], %s47
      %s49 = sshll.u32 [#allocation7], 4
      %s50 = int_to_ptr.vmem [resolvable:$true] %s49
      %55 = dma.hbm_to_vmem [thread:$0]  %s3, 2048, %s50, [#allocation6], 64, 64, 4
    $region17: #{tpu_custom_call.1} parent=1 // pred_fallthru
      _
    // Predicated region
    $region18: #{tpu_custom_call.1} parent=1 // pred_check
      _
    $region19: #{tpu_custom_call.1} parent=1 // pred_check_branch
      %57 = sbr.rel (0) target = $region21
    $region20: #{tpu_custom_call.1} parent=1 // pred_region
      _
    $region21: #{tpu_custom_call.1} parent=1 // pred_fallthru
      _
    // Predicated region
    $region22: #{tpu_custom_call.1} parent=1 // pred_check
      _
    $region23: #{tpu_custom_call.1} parent=1 // pred_check_branch
      %59 = sbr.rel (0) target = $region25
    $region24: #{tpu_custom_call.1} parent=1 // pred_region
      _
    $region25: #{tpu_custom_call.1} parent=1 // pred_fallthru
      _
    // Predicated region
    $region26: #{tpu_custom_call.1} parent=1 // pred_check
      _
    $region27: #{tpu_custom_call.1} parent=1 // pred_check_branch
      %61 = sbr.rel (0) target = $region29
    $region28: #{tpu_custom_call.1} parent=1 // pred_region
      _
    $region29: #{tpu_custom_call.1} parent=1 // pred_fallthru
      _
    // Predicated region
    $region30: #{tpu_custom_call.1} parent=1 // pred_check
      _
    $region31: #{tpu_custom_call.1} parent=1 // pred_check_branch
      %63 = sbr.rel (0) target = $region33
    $region32: #{tpu_custom_call.1} parent=1 // pred_region
      %s65 = ssub.s32 1024, 1024
      %66 = vsyncadd [#allocation9], %s65
      %s67 = sshll.u32 [#allocation8], 4
      %s68 = int_to_ptr.vmem [resolvable:$true] %s67
      %73 = dma.hbm_to_vmem [thread:$0]  %s7, 1024, %s68, [#allocation9], 64, 64, 4
    $region33: #{tpu_custom_call.1} parent=1 // pred_fallthru
      _
    // Predicated region
    $region34: #{tpu_custom_call.1} parent=1 // pred_check
      _
    $region35: #{tpu_custom_call.1} parent=1 // pred_check_branch
      %75 = sbr.rel (0) target = $region37
    $region36: #{tpu_custom_call.1} parent=1 // pred_region
      _
    $region37: #{tpu_custom_call.1} parent=1 // pred_fallthru
      _
    // Predicated region
    $region38: #{tpu_custom_call.1} parent=1 // pred_check
      _
    $region39: #{tpu_custom_call.1} parent=1 // pred_check_branch
      %77 = sbr.rel (0) target = $region41
    $region40: #{tpu_custom_call.1} parent=1 // pred_region
      _
    $region41: #{tpu_custom_call.1} parent=1 // pred_fallthru
      _
    // Predicated region
    $region42: #{tpu_custom_call.1} parent=1 // pred_check
      _
    $region43: #{tpu_custom_call.1} parent=1 // pred_check_branch
      %79 = sbr.rel (0) target = $region45
    $region44: #{tpu_custom_call.1} parent=1 // pred_region
      _
    $region45: #{tpu_custom_call.1} parent=1 // pred_fallthru
      _
    // Predicated region
    $region46: #{tpu_custom_call.1} parent=1 // pred_check
      _
    $region47: #{tpu_custom_call.1} parent=1 // pred_check_branch
      %81 = sbr.rel (0) target = $region49
    $region48: #{tpu_custom_call.1} parent=1 // pred_region
      %82 = dma.done [#allocation3], 128
    $region49: #{tpu_custom_call.1} parent=1 // pred_fallthru
      _
    // Predicated region
    $region50: #{tpu_custom_call.1} parent=1 // pred_check
      _
    $region51: #{tpu_custom_call.1} parent=1 // pred_check_branch
      %84 = sbr.rel (0) target = $region53
    $region52: #{tpu_custom_call.1} parent=1 // pred_region
      %85 = dma.done [#allocation6], 6144
    $region53: #{tpu_custom_call.1} parent=1 // pred_fallthru
      _
    // Predicated region
    $region54: #{tpu_custom_call.1} parent=1 // pred_check
      _
    $region55: #{tpu_custom_call.1} parent=1 // pred_check_branch
      %87 = sbr.rel (0) target = $region57
    $region56: #{tpu_custom_call.1} parent=1 // pred_region
      %88 = dma.done [#allocation6], 2048
    $region57: #{tpu_custom_call.1} parent=1 // pred_fallthru
      _
    // Predicated region
    $region58: #{tpu_custom_call.1} parent=1 // pred_check
      _
    $region59: #{tpu_custom_call.1} parent=1 // pred_check_branch
      %90 = sbr.rel (0) target = $region61
    $region60: #{tpu_custom_call.1} parent=1 // pred_region
      %91 = dma.done [#allocation9], 1024
    $region61: #{tpu_custom_call.1} parent=1 // pred_fallthru
      _
    %v93 = vld [vmem:[#allocation2] sm:$0xff]
    %v94 = vpack.c.bf16 %v93, %v93
    %v95 = vld [vmem:[#allocation5] sm:$0xff]
    %v96 = vld [vmem:[#allocation5 + $0x8] sm:$0xff]
    %v97 = vld [vmem:[#allocation5 + $0x10] sm:$0xff]
    %v98 = vld [vmem:[#allocation5 + $0x18] sm:$0xff]
    %v99 = vld [vmem:[#allocation5 + $0x20] sm:$0xff]
    %v100 = vld [vmem:[#allocation5 + $0x28] sm:$0xff]
    %v101 = vld [vmem:[#allocation5 + $0x30] sm:$0xff]
    %v102 = vld [vmem:[#allocation5 + $0x38] sm:$0xff]
    %v103 = vld [vmem:[#allocation5 + $0x40] sm:$0xff]
    %v104 = vld [vmem:[#allocation5 + $0x48] sm:$0xff]
    %v105 = vld [vmem:[#allocation5 + $0x50] sm:$0xff]
    %v106 = vld [vmem:[#allocation5 + $0x58] sm:$0xff]
    %v107 = vld [vmem:[#allocation5 + $0x60] sm:$0xff]
    %v108 = vld [vmem:[#allocation5 + $0x68] sm:$0xff]
    %v109 = vld [vmem:[#allocation5 + $0x70] sm:$0xff]
    %v110 = vld [vmem:[#allocation5 + $0x78] sm:$0xff]
    %v111 = vld [vmem:[#allocation5 + $0x80] sm:$0xff]
    %v112 = vld [vmem:[#allocation5 + $0x88] sm:$0xff]
    %v113 = vld [vmem:[#allocation5 + $0x90] sm:$0xff]
    %v114 = vld [vmem:[#allocation5 + $0x98] sm:$0xff]
    %v115 = vld [vmem:[#allocation5 + $0xa0] sm:$0xff]
    %v116 = vld [vmem:[#allocation5 + $0xa8] sm:$0xff]
    %v117 = vld [vmem:[#allocation5 + $0xb0] sm:$0xff]
    %v118 = vld [vmem:[#allocation5 + $0xb8] sm:$0xff]
    %v119 = vld [vmem:[#allocation5 + $0xc0] sm:$0xff]
    %v120 = vld [vmem:[#allocation5 + $0xc8] sm:$0xff]
    %v121 = vld [vmem:[#allocation5 + $0xd0] sm:$0xff]
    %v122 = vld [vmem:[#allocation5 + $0xd8] sm:$0xff]
    %v123 = vld [vmem:[#allocation5 + $0xe0] sm:$0xff]
    %v124 = vld [vmem:[#allocation5 + $0xe8] sm:$0xff]
    %v125 = vld [vmem:[#allocation5 + $0xf0] sm:$0xff]
    %v126 = vld [vmem:[#allocation5 + $0xf8] sm:$0xff]
    %v127 = vld [vmem:[#allocation5 + $0x100] sm:$0xff]
    %v128 = vld [vmem:[#allocation5 + $0x108] sm:$0xff]
    %v129 = vld [vmem:[#allocation5 + $0x110] sm:$0xff]
    %v130 = vld [vmem:[#allocation5 + $0x118] sm:$0xff]
    %v131 = vld [vmem:[#allocation5 + $0x120] sm:$0xff]
    %v132 = vld [vmem:[#allocation5 + $0x128] sm:$0xff]
    %v133 = vld [vmem:[#allocation5 + $0x130] sm:$0xff]
    %v134 = vld [vmem:[#allocation5 + $0x138] sm:$0xff]
    %v135 = vld [vmem:[#allocation5 + $0x140] sm:$0xff]
    %v136 = vld [vmem:[#allocation5 + $0x148] sm:$0xff]
    %v137 = vld [vmem:[#allocation5 + $0x150] sm:$0xff]
    %v138 = vld [vmem:[#allocation5 + $0x158] sm:$0xff]
    %v139 = vld [vmem:[#allocation5 + $0x160] sm:$0xff]
    %v140 = vld [vmem:[#allocation5 + $0x168] sm:$0xff]
    %v141 = vld [vmem:[#allocation5 + $0x170] sm:$0xff]
    %v142 = vld [vmem:[#allocation5 + $0x178] sm:$0xff]
    %v143 = vld [vmem:[%s2] sm:$0x3f]
    %v145 = vlaneseq
    %v146 = vshrl.u32 %v145, 7
    %v147 = vsub.s32 0, %v146
    %v148 = vrot.slane %v143, %v147
    %v149 = vlaneseq
    %v150 = vshrl.u32 %v149, 7
    %v151 = vsub.s32 1, %v150
    %v152 = vrot.slane %v143, %v151
    %v153 = vlaneseq
    %v154 = vshrl.u32 %v153, 7
    %v155 = vsub.s32 2, %v154
    %v156 = vrot.slane %v143, %v155
    %v157 = vlaneseq
    %v158 = vshrl.u32 %v157, 7
    %v159 = vsub.s32 3, %v158
    %v160 = vrot.slane %v143, %v159
    %v161 = vlaneseq
    %v162 = vshrl.u32 %v161, 7
    %v163 = vsub.s32 4, %v162
    %v164 = vrot.slane %v143, %v163
    %v165 = vlaneseq
    %v166 = vshrl.u32 %v165, 7
    %v167 = vsub.s32 5, %v166
    %v168 = vrot.slane %v143, %v167
    %v223 = vunpack.c.l.b16 %v95
    %v224 = vunpack.c.h.b16 %v95
    %v225 = vunpack.c.l.b16 %v96
    %v226 = vunpack.c.h.b16 %v96
    %v227 = vunpack.c.l.b16 %v97
    %v228 = vunpack.c.h.b16 %v97
    %v229 = vunpack.c.l.b16 %v98
    %v230 = vunpack.c.h.b16 %v98
    %v231 = vunpack.c.l.b16 %v99
    %v232 = vunpack.c.h.b16 %v99
    %v233 = vunpack.c.l.b16 %v100
    %v234 = vunpack.c.h.b16 %v100
    %v235 = vunpack.c.l.b16 %v101
    %v236 = vunpack.c.h.b16 %v101
    %v237 = vunpack.c.l.b16 %v102
    %v238 = vunpack.c.h.b16 %v102
    %v239 = vunpack.c.l.b16 %v103
    %v240 = vunpack.c.h.b16 %v103
    %v241 = vunpack.c.l.b16 %v104
    %v242 = vunpack.c.h.b16 %v104
    %v243 = vunpack.c.l.b16 %v105
    %v244 = vunpack.c.h.b16 %v105
    %v245 = vunpack.c.l.b16 %v106
    %v246 = vunpack.c.h.b16 %v106
    %v247 = vunpack.c.l.b16 %v107
    %v248 = vunpack.c.h.b16 %v107
    %v249 = vunpack.c.l.b16 %v108
    %v250 = vunpack.c.h.b16 %v108
    %v251 = vunpack.c.l.b16 %v109
    %v252 = vunpack.c.h.b16 %v109
    %v253 = vunpack.c.l.b16 %v110
    %v254 = vunpack.c.h.b16 %v110
    %v255 = vunpack.c.l.b16 %v111
    %v256 = vunpack.c.h.b16 %v111
    %v257 = vunpack.c.l.b16 %v112
    %v258 = vunpack.c.h.b16 %v112
    %v259 = vunpack.c.l.b16 %v113
    %v260 = vunpack.c.h.b16 %v113
    %v261 = vunpack.c.l.b16 %v114
    %v262 = vunpack.c.h.b16 %v114
    %v263 = vunpack.c.l.b16 %v115
    %v264 = vunpack.c.h.b16 %v115
    %v265 = vunpack.c.l.b16 %v116
    %v266 = vunpack.c.h.b16 %v116
    %v267 = vunpack.c.l.b16 %v117
    %v268 = vunpack.c.h.b16 %v117
    %v269 = vunpack.c.l.b16 %v118
    %v270 = vunpack.c.h.b16 %v118
    %v271 = vunpack.c.l.b16 %v119
    %v272 = vunpack.c.h.b16 %v119
    %v273 = vunpack.c.l.b16 %v120
    %v274 = vunpack.c.h.b16 %v120
    %v275 = vunpack.c.l.b16 %v121
    %v276 = vunpack.c.h.b16 %v121
    %v277 = vunpack.c.l.b16 %v122
    %v278 = vunpack.c.h.b16 %v122
    %v279 = vunpack.c.l.b16 %v123
    %v280 = vunpack.c.h.b16 %v123
    %v281 = vunpack.c.l.b16 %v124
    %v282 = vunpack.c.h.b16 %v124
    %v283 = vunpack.c.l.b16 %v125
    %v284 = vunpack.c.h.b16 %v125
    %v285 = vunpack.c.l.b16 %v126
    %v286 = vunpack.c.h.b16 %v126
    %v287 = vunpack.c.l.b16 %v127
    %v288 = vunpack.c.h.b16 %v127
    %v289 = vunpack.c.l.b16 %v128
    %v290 = vunpack.c.h.b16 %v128
    %v291 = vunpack.c.l.b16 %v129
    %v292 = vunpack.c.h.b16 %v129
    %v293 = vunpack.c.l.b16 %v130
    %v294 = vunpack.c.h.b16 %v130
    %v295 = vunpack.c.l.b16 %v131
    %v296 = vunpack.c.h.b16 %v131
    %v297 = vunpack.c.l.b16 %v132
    %v298 = vunpack.c.h.b16 %v132
    %v299 = vunpack.c.l.b16 %v133
    %v300 = vunpack.c.h.b16 %v133
    %v301 = vunpack.c.l.b16 %v134
    %v302 = vunpack.c.h.b16 %v134
    %v303 = vunpack.c.l.b16 %v135
    %v304 = vunpack.c.h.b16 %v135
    %v305 = vunpack.c.l.b16 %v136
    %v306 = vunpack.c.h.b16 %v136
    %v307 = vunpack.c.l.b16 %v137
    %v308 = vunpack.c.h.b16 %v137
    %v309 = vunpack.c.l.b16 %v138
    %v310 = vunpack.c.h.b16 %v138
    %v311 = vunpack.c.l.b16 %v139
    %v312 = vunpack.c.h.b16 %v139
    %v313 = vunpack.c.l.b16 %v140
    %v314 = vunpack.c.h.b16 %v140
    %v315 = vunpack.c.l.b16 %v141
    %v316 = vunpack.c.h.b16 %v141
    %v317 = vunpack.c.l.b16 %v142
    %v318 = vunpack.c.h.b16 %v142
    %v319 = vpack.c.b16 %v229, %v223
    %v320 = vpack.c.b16 %v230, %v224
    %v321 = vpack.c.b16 %v231, %v225
    %v322 = vpack.c.b16 %v232, %v226
    %v323 = vpack.c.b16 %v233, %v227
    %v324 = vpack.c.b16 %v234, %v228
    %v325 = vpack.c.b16 %v241, %v235
    %v326 = vpack.c.b16 %v242, %v236
    %v327 = vpack.c.b16 %v243, %v237
    %v328 = vpack.c.b16 %v244, %v238
    %v329 = vpack.c.b16 %v245, %v239
    %v330 = vpack.c.b16 %v246, %v240
    %v331 = vpack.c.b16 %v253, %v247
    %v332 = vpack.c.b16 %v254, %v248
    %v333 = vpack.c.b16 %v255, %v249
    %v334 = vpack.c.b16 %v256, %v250
    %v335 = vpack.c.b16 %v257, %v251
    %v336 = vpack.c.b16 %v258, %v252
    %v337 = vpack.c.b16 %v265, %v259
    %v338 = vpack.c.b16 %v266, %v260
    %v339 = vpack.c.b16 %v267, %v261
    %v340 = vpack.c.b16 %v268, %v262
    %v341 = vpack.c.b16 %v269, %v263
    %v342 = vpack.c.b16 %v270, %v264
    %v343 = vpack.c.b16 %v277, %v271
    %v344 = vpack.c.b16 %v278, %v272
    %v345 = vpack.c.b16 %v279, %v273
    %v346 = vpack.c.b16 %v280, %v274
    %v347 = vpack.c.b16 %v281, %v275
    %v348 = vpack.c.b16 %v282, %v276
    %v349 = vpack.c.b16 %v289, %v283
    %v350 = vpack.c.b16 %v290, %v284
    %v351 = vpack.c.b16 %v291, %v285
    %v352 = vpack.c.b16 %v292, %v286
    %v353 = vpack.c.b16 %v293, %v287
    %v354 = vpack.c.b16 %v294, %v288
    %v355 = vpack.c.b16 %v301, %v295
    %v356 = vpack.c.b16 %v302, %v296
    %v357 = vpack.c.b16 %v303, %v297
    %v358 = vpack.c.b16 %v304, %v298
    %v359 = vpack.c.b16 %v305, %v299
    %v360 = vpack.c.b16 %v306, %v300
    %v361 = vpack.c.b16 %v313, %v307
    %v362 = vpack.c.b16 %v314, %v308
    %v363 = vpack.c.b16 %v315, %v309
    %v364 = vpack.c.b16 %v316, %v310
    %v365 = vpack.c.b16 %v317, %v311
    %v366 = vpack.c.b16 %v318, %v312
    %415 = vmatprep.subr.bf16.mxu0 %v320
    %416 = vmatpush1.bf16.msra.mxu0 %v319
    %417 = vmatprep.subr.bf16.mxu0 %v326
    %418 = vmatpush1.bf16.msra.mxu0 %v325
    %419 = vmatprep.subr.bf16.mxu0 %v332
    %420 = vmatpush1.bf16.msra.mxu0 %v331
    %421 = vmatprep.subr.bf16.mxu0 %v338
    %422 = vmatpush1.bf16.msra.mxu0 %v337
    %423 = vmatprep.subr.bf16.mxu0 %v344
    %424 = vmatpush1.bf16.msra.mxu0 %v343
    %425 = vmatprep.subr.bf16.mxu0 %v350
    %426 = vmatpush1.bf16.msra.mxu0 %v349
    %427 = vmatprep.subr.bf16.mxu0 %v356
    %428 = vmatpush1.bf16.msra.mxu0 %v355
    %429 = vmatprep.subr.bf16.mxu0 %v362
    %430 = vmatpush1.bf16.msra.mxu0 %v361
    %431 = vmatprep.subr.bf16.mxu0 0
    %432 = vmatpush1.bf16.msra.mxu0 0
    %433 = vmatprep.subr.bf16.mxu0 0
    %434 = vmatpush1.bf16.msra.mxu0 0
    %435 = vmatprep.subr.bf16.mxu0 0
    %436 = vmatpush1.bf16.msra.mxu0 0
    %437 = vmatprep.subr.bf16.mxu0 0
    %438 = vmatpush1.bf16.msra.mxu0 0
    %439 = vmatprep.subr.bf16.mxu0 0
    %440 = vmatpush1.bf16.msra.mxu0 0
    %441 = vmatprep.subr.bf16.mxu0 0
    %442 = vmatpush1.bf16.msra.mxu0 0
    %443 = vmatprep.subr.bf16.mxu0 0
    %444 = vmatpush1.bf16.msra.mxu0 0
    %445 = vmatprep.subr.bf16.mxu0 0
    %446 = vmatpush1.bf16.msra.mxu0 0
    %447 = vmatprep.mubr.bf16.mxu0 0
    %448 = vmatmul.mubr.bf16.gmra.mrb[0].mxu0 %v94
    %v449 = vpop.f32.mrb[0].mxu0
    %v450 = vadd.f32 %v148, %v449
    %v451 = vpop.f32.mrb[0].mxu0
    %v452 = vadd.f32 %v152, %v451
    %v453 = vpop.f32.mrb[0].mxu0
    %v454 = vpop.f32.mrb[0].mxu0
    %455 = vdwg.mxu0
    %456 = vmatprep.subr.bf16.mxu0 %v322
    %457 = vmatpush1.bf16.msra.mxu0 %v321
    %458 = vmatprep.subr.bf16.mxu0 %v328
    %459 = vmatpush1.bf16.msra.mxu0 %v327
    %460 = vmatprep.subr.bf16.mxu0 %v334
    %461 = vmatpush1.bf16.msra.mxu0 %v333
    %462 = vmatprep.subr.bf16.mxu0 %v340
    %463 = vmatpush1.bf16.msra.mxu0 %v339
    %464 = vmatprep.subr.bf16.mxu0 %v346
    %465 = vmatpush1.bf16.msra.mxu0 %v345
    %466 = vmatprep.subr.bf16.mxu0 %v352
    %467 = vmatpush1.bf16.msra.mxu0 %v351
    %468 = vmatprep.subr.bf16.mxu0 %v358
    %469 = vmatpush1.bf16.msra.mxu0 %v357
    %470 = vmatprep.subr.bf16.mxu0 %v364
    %471 = vmatpush1.bf16.msra.mxu0 %v363
    %472 = vmatprep.subr.bf16.mxu0 0
    %473 = vmatpush1.bf16.msra.mxu0 0
    %474 = vmatprep.subr.bf16.mxu0 0
    %475 = vmatpush1.bf16.msra.mxu0 0
    %476 = vmatprep.subr.bf16.mxu0 0
    %477 = vmatpush1.bf16.msra.mxu0 0
    %478 = vmatprep.subr.bf16.mxu0 0
    %479 = vmatpush1.bf16.msra.mxu0 0
    %480 = vmatprep.subr.bf16.mxu0 0
    %481 = vmatpush1.bf16.msra.mxu0 0
    %482 = vmatprep.subr.bf16.mxu0 0
    %483 = vmatpush1.bf16.msra.mxu0 0
    %484 = vmatprep.subr.bf16.mxu0 0
    %485 = vmatpush1.bf16.msra.mxu0 0
    %486 = vmatprep.subr.bf16.mxu0 0
    %487 = vmatpush1.bf16.msra.mxu0 0
    %488 = vmatprep.mubr.bf16.mxu0 0
    %489 = vmatmul.mubr.bf16.gmra.mrb[0].mxu0 %v94
    %v490 = vpop.f32.mrb[0].mxu0
    %v491 = vadd.f32 %v156, %v490
    %v492 = vpop.f32.mrb[0].mxu0
    %v493 = vadd.f32 %v160, %v492
    %v494 = vpop.f32.mrb[0].mxu0
    %v495 = vpop.f32.mrb[0].mxu0
    %496 = vdwg.mxu0
    %497 = vmatprep.subr.bf16.mxu0 %v324
    %498 = vmatpush1.bf16.msra.mxu0 %v323
    %499 = vmatprep.subr.bf16.mxu0 %v330
    %500 = vmatpush1.bf16.msra.mxu0 %v329
    %501 = vmatprep.subr.bf16.mxu0 %v336
    %502 = vmatpush1.bf16.msra.mxu0 %v335
    %503 = vmatprep.subr.bf16.mxu0 %v342
    %504 = vmatpush1.bf16.msra.mxu0 %v341
    %505 = vmatprep.subr.bf16.mxu0 %v348
    %506 = vmatpush1.bf16.msra.mxu0 %v347
    %507 = vmatprep.subr.bf16.mxu0 %v354
    %508 = vmatpush1.bf16.msra.mxu0 %v353
    %509 = vmatprep.subr.bf16.mxu0 %v360
    %510 = vmatpush1.bf16.msra.mxu0 %v359
    %511 = vmatprep.subr.bf16.mxu0 %v366
    %512 = vmatpush1.bf16.msra.mxu0 %v365
    %513 = vmatprep.subr.bf16.mxu0 0
    %514 = vmatpush1.bf16.msra.mxu0 0
    %515 = vmatprep.subr.bf16.mxu0 0
    %516 = vmatpush1.bf16.msra.mxu0 0
    %517 = vmatprep.subr.bf16.mxu0 0
    %518 = vmatpush1.bf16.msra.mxu0 0
    %519 = vmatprep.subr.bf16.mxu0 0
    %520 = vmatpush1.bf16.msra.mxu0 0
    %521 = vmatprep.subr.bf16.mxu0 0
    %522 = vmatpush1.bf16.msra.mxu0 0
    %523 = vmatprep.subr.bf16.mxu0 0
    %524 = vmatpush1.bf16.msra.mxu0 0
    %525 = vmatprep.subr.bf16.mxu0 0
    %526 = vmatpush1.bf16.msra.mxu0 0
    %527 = vmatprep.subr.bf16.mxu0 0
    %528 = vmatpush1.bf16.msra.mxu0 0
    %529 = vmatprep.mubr.bf16.mxu0 0
    %530 = vmatmul.mubr.bf16.gmra.mrb[0].mxu0 %v94
    %v531 = vpop.f32.mrb[0].mxu0
    %v532 = vadd.f32 %v164, %v531
    %v533 = vpop.f32.mrb[0].mxu0
    %v534 = vadd.f32 %v168, %v533
    %v535 = vpop.f32.mrb[0].mxu0
    %v536 = vpop.f32.mrb[0].mxu0
    %537 = vdwg.mxu0
    %v538 = vpack.c.bf16 %v450, %v450
    %v539 = vpack.c.bf16 %v452, %v452
    %540 = vxpose.xlu0.c.b16.start [1/8] %v538, 128
    %541 = vxpose.xlu0.c.b16.cont [2/8] 0, 128
    %542 = vxpose.xlu0.c.b16.cont [3/8] 0, 128
    %543 = vxpose.xlu0.c.b16.cont [4/8] 0, 128
    %544 = vxpose.xlu0.c.b16.cont [5/8] 0, 128
    %545 = vxpose.xlu0.c.b16.cont [6/8] 0, 128
    %546 = vxpose.xlu0.c.b16.cont [7/8] 0, 128
    %547 = vxpose.xlu0.c.b16.end [8/8] 0, 128
    %v548 = vpop.trf.xlu0
    %v549 = vpop.trf.xlu0
    %v550 = vpop.trf.xlu0
    %v551 = vpop.trf.xlu0
    %v552 = vpop.trf.xlu0
    %v553 = vpop.trf.xlu0
    %v554 = vpop.trf.xlu0
    %v555 = vpop.trf.xlu0
    %vm556 = vcmask 64512
    %v558 = vsel %vm556, %v548, 0
    %v561 = vsel %vm556, %v549, 0
    %v564 = vsel %vm556, %v550, 0
    %v567 = vsel %vm556, %v551, 0
    %v570 = vsel %vm556, %v552, 0
    %v573 = vsel %vm556, %v553, 0
    %v576 = vsel %vm556, %v554, 0
    %v579 = vsel %vm556, %v555, 0
    %vm581 = vcmask 1043456
    %v583 = vsel %vm581, %v539, 0
    %585 = vmatprep.subr.bf16.mxu0 0
    %586 = vmatpush1.bf16.msra.mxu0 %v583
    %587 = vmatprep.subr.bf16.mxu0 0
    %588 = vmatpush1.bf16.msra.mxu0 0
    %589 = vmatprep.subr.bf16.mxu0 0
    %590 = vmatpush1.bf16.msra.mxu0 0
    %591 = vmatprep.subr.bf16.mxu0 0
    %592 = vmatpush1.bf16.msra.mxu0 0
    %593 = vmatprep.subr.bf16.mxu0 0
    %594 = vmatpush1.bf16.msra.mxu0 0
    %595 = vmatprep.subr.bf16.mxu0 0
    %596 = vmatpush1.bf16.msra.mxu0 0
    %597 = vmatprep.subr.bf16.mxu0 0
    %598 = vmatpush1.bf16.msra.mxu0 0
    %599 = vmatprep.subr.bf16.mxu0 0
    %600 = vmatpush1.bf16.msra.mxu0 0
    %601 = vmatprep.subr.bf16.mxu0 0
    %602 = vmatpush1.bf16.msra.mxu0 0
    %603 = vmatprep.subr.bf16.mxu0 0
    %604 = vmatpush1.bf16.msra.mxu0 0
    %605 = vmatprep.subr.bf16.mxu0 0
    %606 = vmatpush1.bf16.msra.mxu0 0
    %607 = vmatprep.subr.bf16.mxu0 0
    %608 = vmatpush1.bf16.msra.mxu0 0
    %609 = vmatprep.subr.bf16.mxu0 0
    %610 = vmatpush1.bf16.msra.mxu0 0
    %611 = vmatprep.subr.bf16.mxu0 0
    %612 = vmatpush1.bf16.msra.mxu0 0
    %613 = vmatprep.subr.bf16.mxu0 0
    %614 = vmatpush1.bf16.msra.mxu0 0
    %615 = vmatprep.subr.bf16.mxu0 0
    %616 = vmatpush1.bf16.msra.mxu0 0
    %617 = vmatprep.mubr.bf16.mxu0 0
    %618 = vmatmul.mubr.bf16.gmra.mrb[0].mxu0 %v558
    %v619 = vpop.f32.mrb[0].mxu0
    %v620 = vadd.f32 0.0, %v619
    %v621 = vpop.f32.mrb[0].mxu0
    %v622 = vpop.f32.mrb[0].mxu0
    %v623 = vadd.f32 0.0, %v622
    %v624 = vpop.f32.mrb[0].mxu0
    %625 = vmatprep.mubr.bf16.mxu0 0
    %626 = vmatmul.mubr.bf16.gmra.mrb[0].mxu0 %v561
    %v627 = vpop.f32.mrb[0].mxu0
    %v628 = vadd.f32 0.0, %v627
    %v629 = vpop.f32.mrb[0].mxu0
    %v630 = vpop.f32.mrb[0].mxu0
    %v631 = vadd.f32 0.0, %v630
    %v632 = vpop.f32.mrb[0].mxu0
    %633 = vmatprep.mubr.bf16.mxu0 0
    %634 = vmatmul.mubr.bf16.gmra.mrb[0].mxu0 %v564
    %v635 = vpop.f32.mrb[0].mxu0
    %v636 = vadd.f32 0.0, %v635
    %v637 = vpop.f32.mrb[0].mxu0
    %v638 = vpop.f32.mrb[0].mxu0
    %v639 = vadd.f32 0.0, %v638
    %v640 = vpop.f32.mrb[0].mxu0
    %641 = vmatprep.mubr.bf16.mxu0 0
    %642 = vmatmul.mubr.bf16.gmra.mrb[0].mxu0 %v567
    %v643 = vpop.f32.mrb[0].mxu0
    %v644 = vadd.f32 0.0, %v643
    %v645 = vpop.f32.mrb[0].mxu0
    %v646 = vpop.f32.mrb[0].mxu0
    %v647 = vadd.f32 0.0, %v646
    %v648 = vpop.f32.mrb[0].mxu0
    %649 = vmatprep.mubr.bf16.mxu0 0
    %650 = vmatmul.mubr.bf16.gmra.mrb[0].mxu0 %v570
    %v651 = vpop.f32.mrb[0].mxu0
    %v652 = vadd.f32 0.0, %v651
    %v653 = vpop.f32.mrb[0].mxu0
    %v654 = vpop.f32.mrb[0].mxu0
    %v655 = vadd.f32 0.0, %v654
    %v656 = vpop.f32.mrb[0].mxu0
    %657 = vmatprep.mubr.bf16.mxu0 0
    %658 = vmatmul.mubr.bf16.gmra.mrb[0].mxu0 %v573
    %v659 = vpop.f32.mrb[0].mxu0
    %v660 = vadd.f32 0.0, %v659
    %v661 = vpop.f32.mrb[0].mxu0
    %v662 = vpop.f32.mrb[0].mxu0
    %v663 = vadd.f32 0.0, %v662
    %v664 = vpop.f32.mrb[0].mxu0
    %665 = vmatprep.mubr.bf16.mxu0 0
    %666 = vmatmul.mubr.bf16.gmra.mrb[0].mxu0 %v576
    %v667 = vpop.f32.mrb[0].mxu0
    %v668 = vadd.f32 0.0, %v667
    %v669 = vpop.f32.mrb[0].mxu0
    %v670 = vpop.f32.mrb[0].mxu0
    %v671 = vadd.f32 0.0, %v670
    %v672 = vpop.f32.mrb[0].mxu0
    %673 = vmatprep.mubr.bf16.mxu0 0
    %674 = vmatmul.mubr.bf16.gmra.mrb[0].mxu0 %v579
    %v675 = vpop.f32.mrb[0].mxu0
    %v676 = vadd.f32 0.0, %v675
    %v677 = vpop.f32.mrb[0].mxu0
    %v678 = vpop.f32.mrb[0].mxu0
    %v679 = vadd.f32 0.0, %v678
    %v680 = vpop.f32.mrb[0].mxu0
    %681 = vdwg.mxu0
    %v682 = vmax.f32 %v620, %v636
    %v683 = vmax.f32 %v623, %v639
    %v684 = vmax.f32 %v628, %v644
    %v685 = vmax.f32 %v631, %v647
    %v686 = vmax.f32 %v682, %v652
    %v687 = vmax.f32 %v683, %v655
    %v688 = vmax.f32 %v684, %v660
    %v689 = vmax.f32 %v685, %v663
    %v690 = vmax.f32 %v686, %v668
    %v691 = vmax.f32 %v687, %v671
    %v692 = vmax.f32 %v688, %v676
    %v693 = vmax.f32 %v689, %v679
    %v694 = vmax.f32 %v690, %v691
    %v695 = vmax.f32 %v692, %v693
    %v696 = vmax.f32 %v694, %v695
    %v697 = vrot.slane %v696, 4
    %v698 = vmax.f32 %v696, %v697
    %v699 = vrot.slane %v698, 2
    %v700 = vmax.f32 %v698, %v699
    %v701 = vrot.slane %v700, 1
    %v702 = vmax.f32 %v700, %v701
    %v703 = vsub.f32 %v620, %v702
    %v704 = vsub.f32 %v623, %v702
    %v705 = vsub.f32 %v628, %v702
    %v706 = vsub.f32 %v631, %v702
    %v707 = vsub.f32 %v636, %v702
    %v708 = vsub.f32 %v639, %v702
    %v709 = vsub.f32 %v644, %v702
    %v710 = vsub.f32 %v647, %v702
    %v711 = vsub.f32 %v652, %v702
    %v712 = vsub.f32 %v655, %v702
    %v713 = vsub.f32 %v660, %v702
    %v714 = vsub.f32 %v663, %v702
    %v715 = vsub.f32 %v668, %v702
    %v716 = vsub.f32 %v671, %v702
    %v717 = vsub.f32 %v676, %v702
    %v718 = vsub.f32 %v679, %v702
    %v719 = vmul.f32 %v703, 1.442695
    %v720 = vpow.pop %v719
    %v721 = vmul.f32 %v704, 1.442695
    %v722 = vpow.pop %v721
    %v723 = vmul.f32 %v705, 1.442695
    %v724 = vpow.pop %v723
    %v725 = vmul.f32 %v706, 1.442695
    %v726 = vpow.pop %v725
    %v727 = vmul.f32 %v707, 1.442695
    %v728 = vpow.pop %v727
    %v729 = vmul.f32 %v708, 1.442695
    %v730 = vpow.pop %v729
    %v731 = vmul.f32 %v709, 1.442695
    %v732 = vpow.pop %v731
    %v733 = vmul.f32 %v710, 1.442695
    %v734 = vpow.pop %v733
    %v735 = vmul.f32 %v711, 1.442695
    %v736 = vpow.pop %v735
    %v737 = vmul.f32 %v712, 1.442695
    %v738 = vpow.pop %v737
    %v739 = vmul.f32 %v713, 1.442695
    %v740 = vpow.pop %v739
    %v741 = vmul.f32 %v714, 1.442695
    %v742 = vpow.pop %v741
    %v743 = vmul.f32 %v715, 1.442695
    %v744 = vpow.pop %v743
    %v745 = vmul.f32 %v716, 1.442695
    %v746 = vpow.pop %v745
    %v747 = vmul.f32 %v717, 1.442695
    %v748 = vpow.pop %v747
    %v749 = vmul.f32 %v718, 1.442695
    %v750 = vpow.pop %v749
    %v751 = vadd.f32 %v720, %v722
    %v752 = vadd.f32 %v751, %v724
    %v753 = vadd.f32 %v752, %v726
    %v754 = vadd.f32 %v753, %v728
    %v755 = vadd.f32 %v754, %v730
    %v756 = vadd.f32 %v755, %v732
    %v757 = vadd.f32 %v756, %v734
    %v758 = vadd.f32 %v757, %v736
    %v759 = vadd.f32 %v758, %v738
    %v760 = vadd.f32 %v759, %v740
    %v761 = vadd.f32 %v760, %v742
    %v762 = vadd.f32 %v761, %v744
    %v763 = vadd.f32 %v762, %v746
    %v764 = vadd.f32 %v763, %v748
    %v765 = vadd.f32 %v764, %v750
    %v766 = vrot.slane %v765, 4
    %v767 = vadd.f32 %v765, %v766
    %v768 = vrot.slane %v767, 2
    %v769 = vadd.f32 %v767, %v768
    %v770 = vrot.slane %v769, 1
    %v771 = vadd.f32 %v769, %v770
    %v772 = vrcp.pop %v771
    %v773 = vmul.f32 %v491, %v772
    %v774 = vpack.c.bf16 %v773, %v773
    %v775 = vpack.c.bf16 %v722, %v720
    %v776 = vpack.c.bf16 %v726, %v724
    %v777 = vpack.c.bf16 %v730, %v728
    %v778 = vpack.c.bf16 %v734, %v732
    %v779 = vpack.c.bf16 %v738, %v736
    %v780 = vpack.c.bf16 %v742, %v740
    %v781 = vpack.c.bf16 %v746, %v744
    %v782 = vpack.c.bf16 %v750, %v748
    %783 = vmatprep.subr.bf16.mxu0 0
    %784 = vmatpush1.bf16.xpose.msra.mxu0 %v775
    %785 = vmatprep.subr.bf16.mxu0 0
    %786 = vmatpush1.bf16.xpose.msra.mxu0 %v776
    %787 = vmatprep.subr.bf16.mxu0 0
    %788 = vmatpush1.bf16.xpose.msra.mxu0 %v777
    %789 = vmatprep.subr.bf16.mxu0 0
    %790 = vmatpush1.bf16.xpose.msra.mxu0 %v778
    %791 = vmatprep.subr.bf16.mxu0 0
    %792 = vmatpush1.bf16.xpose.msra.mxu0 %v779
    %793 = vmatprep.subr.bf16.mxu0 0
    %794 = vmatpush1.bf16.xpose.msra.mxu0 %v780
    %795 = vmatprep.subr.bf16.mxu0 0
    %796 = vmatpush1.bf16.xpose.msra.mxu0 %v781
    %797 = vmatprep.subr.bf16.mxu0 0
    %798 = vmatpush1.bf16.xpose.msra.mxu0 %v782
    %799 = vmatprep.subr.bf16.mxu0 0
    %800 = vmatpush1.bf16.xpose.msra.mxu0 0
    %801 = vmatprep.subr.bf16.mxu0 0
    %802 = vmatpush1.bf16.xpose.msra.mxu0 0
    %803 = vmatprep.subr.bf16.mxu0 0
    %804 = vmatpush1.bf16.xpose.msra.mxu0 0
    %805 = vmatprep.subr.bf16.mxu0 0
    %806 = vmatpush1.bf16.xpose.msra.mxu0 0
    %807 = vmatprep.subr.bf16.mxu0 0
    %808 = vmatpush1.bf16.xpose.msra.mxu0 0
    %809 = vmatprep.subr.bf16.mxu0 0
    %810 = vmatpush1.bf16.xpose.msra.mxu0 0
    %811 = vmatprep.subr.bf16.mxu0 0
    %812 = vmatpush1.bf16.xpose.msra.mxu0 0
    %813 = vmatprep.subr.bf16.mxu0 0
    %814 = vmatpush1.bf16.xpose.msra.mxu0 0
    %815 = vmatprep.mubr.bf16.mxu0 0
    %816 = vmatmul.mubr.bf16.gmra.mrb[0].mxu0 %v774
    %v817 = vpop.f32.mrb[0].mxu0
    %v818 = vadd.f32 0.0, %v817
    %v819 = vpop.f32.mrb[0].mxu0
    %v820 = vpop.f32.mrb[0].mxu0
    %v821 = vpop.f32.mrb[0].mxu0
    %822 = vdwg.mxu0
    %v823 = vpack.c.bf16 %v818, %v818
    %v824 = vld [vmem:[#allocation7] sm:$0xf]
    %v825 = vld [vmem:[#allocation7 + $0x4] sm:$0xf]
    %v826 = vld [vmem:[#allocation7 + $0x8] sm:$0xf]
    %v827 = vld [vmem:[#allocation7 + $0xc] sm:$0xf]
    %v828 = vld [vmem:[#allocation7 + $0x10] sm:$0xf]
    %v829 = vld [vmem:[#allocation7 + $0x14] sm:$0xf]
    %v830 = vld [vmem:[#allocation7 + $0x18] sm:$0xf]
    %v831 = vld [vmem:[#allocation7 + $0x1c] sm:$0xf]
    %v832 = vld [vmem:[#allocation7 + $0x20] sm:$0xf]
    %v833 = vld [vmem:[#allocation7 + $0x24] sm:$0xf]
    %v834 = vld [vmem:[#allocation7 + $0x28] sm:$0xf]
    %v835 = vld [vmem:[#allocation7 + $0x2c] sm:$0xf]
    %v836 = vld [vmem:[#allocation7 + $0x30] sm:$0xf]
    %v837 = vld [vmem:[#allocation7 + $0x34] sm:$0xf]
    %v838 = vld [vmem:[#allocation7 + $0x38] sm:$0xf]
    %v839 = vld [vmem:[#allocation7 + $0x3c] sm:$0xf]
    %v840 = vpack.c.bf16 %v493, %v493
    %v841 = vpack.c.bf16 %v532, %v532
    %842 = vxpose.xlu0.c.b16.start [1/8] %v840, 128
    %843 = vxpose.xlu0.c.b16.cont [2/8] 0, 128
    %844 = vxpose.xlu0.c.b16.cont [3/8] 0, 128
    %845 = vxpose.xlu0.c.b16.cont [4/8] 0, 128
    %846 = vxpose.xlu0.c.b16.cont [5/8] 0, 128
    %847 = vxpose.xlu0.c.b16.cont [6/8] 0, 128
    %848 = vxpose.xlu0.c.b16.cont [7/8] 0, 128
    %849 = vxpose.xlu0.c.b16.end [8/8] 0, 128
    %v850 = vpop.trf.xlu0
    %v851 = vpop.trf.xlu0
    %v852 = vpop.trf.xlu0
    %v853 = vpop.trf.xlu0
    %v854 = vpop.trf.xlu0
    %v855 = vpop.trf.xlu0
    %v856 = vpop.trf.xlu0
    %v857 = vpop.trf.xlu0
    %v859 = vsel %vm556, %v850, 0
    %v862 = vsel %vm556, %v851, 0
    %v865 = vsel %vm556, %v852, 0
    %v868 = vsel %vm556, %v853, 0
    %v871 = vsel %vm556, %v854, 0
    %v874 = vsel %vm556, %v855, 0
    %v877 = vsel %vm556, %v856, 0
    %v880 = vsel %vm556, %v857, 0
    %v883 = vsel %vm581, %v841, 0
    %885 = vmatprep.subr.bf16.mxu0 0
    %886 = vmatpush1.bf16.msra.mxu0 %v883
    %887 = vmatprep.subr.bf16.mxu0 0
    %888 = vmatpush1.bf16.msra.mxu0 0
    %889 = vmatprep.subr.bf16.mxu0 0
    %890 = vmatpush1.bf16.msra.mxu0 0
    %891 = vmatprep.subr.bf16.mxu0 0
    %892 = vmatpush1.bf16.msra.mxu0 0
    %893 = vmatprep.subr.bf16.mxu0 0
    %894 = vmatpush1.bf16.msra.mxu0 0
    %895 = vmatprep.subr.bf16.mxu0 0
    %896 = vmatpush1.bf16.msra.mxu0 0
    %897 = vmatprep.subr.bf16.mxu0 0
    %898 = vmatpush1.bf16.msra.mxu0 0
    %899 = vmatprep.subr.bf16.mxu0 0
    %900 = vmatpush1.bf16.msra.mxu0 0
    %901 = vmatprep.subr.bf16.mxu0 0
    %902 = vmatpush1.bf16.msra.mxu0 0
    %903 = vmatprep.subr.bf16.mxu0 0
    %904 = vmatpush1.bf16.msra.mxu0 0
    %905 = vmatprep.subr.bf16.mxu0 0
    %906 = vmatpush1.bf16.msra.mxu0 0
    %907 = vmatprep.subr.bf16.mxu0 0
    %908 = vmatpush1.bf16.msra.mxu0 0
    %909 = vmatprep.subr.bf16.mxu0 0
    %910 = vmatpush1.bf16.msra.mxu0 0
    %911 = vmatprep.subr.bf16.mxu0 0
    %912 = vmatpush1.bf16.msra.mxu0 0
    %913 = vmatprep.subr.bf16.mxu0 0
    %914 = vmatpush1.bf16.msra.mxu0 0
    %915 = vmatprep.subr.bf16.mxu0 0
    %916 = vmatpush1.bf16.msra.mxu0 0
    %917 = vmatprep.mubr.bf16.mxu0 0
    %918 = vmatmul.mubr.bf16.gmra.mrb[0].mxu0 %v859
    %v919 = vpop.f32.mrb[0].mxu0
    %v920 = vadd.f32 0.0, %v919
    %v921 = vpop.f32.mrb[0].mxu0
    %v922 = vpop.f32.mrb[0].mxu0
    %v923 = vadd.f32 0.0, %v922
    %v924 = vpop.f32.mrb[0].mxu0
    %925 = vmatprep.mubr.bf16.mxu0 0
    %926 = vmatmul.mubr.bf16.gmra.mrb[0].mxu0 %v862
    %v927 = vpop.f32.mrb[0].mxu0
    %v928 = vadd.f32 0.0, %v927
    %v929 = vpop.f32.mrb[0].mxu0
    %v930 = vpop.f32.mrb[0].mxu0
    %v931 = vadd.f32 0.0, %v930
    %v932 = vpop.f32.mrb[0].mxu0
    %933 = vmatprep.mubr.bf16.mxu0 0
    %934 = vmatmul.mubr.bf16.gmra.mrb[0].mxu0 %v865
    %v935 = vpop.f32.mrb[0].mxu0
    %v936 = vadd.f32 0.0, %v935
    %v937 = vpop.f32.mrb[0].mxu0
    %v938 = vpop.f32.mrb[0].mxu0
    %v939 = vadd.f32 0.0, %v938
    %v940 = vpop.f32.mrb[0].mxu0
    %941 = vmatprep.mubr.bf16.mxu0 0
    %942 = vmatmul.mubr.bf16.gmra.mrb[0].mxu0 %v868
    %v943 = vpop.f32.mrb[0].mxu0
    %v944 = vadd.f32 0.0, %v943
    %v945 = vpop.f32.mrb[0].mxu0
    %v946 = vpop.f32.mrb[0].mxu0
    %v947 = vadd.f32 0.0, %v946
    %v948 = vpop.f32.mrb[0].mxu0
    %949 = vmatprep.mubr.bf16.mxu0 0
    %950 = vmatmul.mubr.bf16.gmra.mrb[0].mxu0 %v871
    %v951 = vpop.f32.mrb[0].mxu0
    %v952 = vadd.f32 0.0, %v951
    %v953 = vpop.f32.mrb[0].mxu0
    %v954 = vpop.f32.mrb[0].mxu0
    %v955 = vadd.f32 0.0, %v954
    %v956 = vpop.f32.mrb[0].mxu0
    %957 = vmatprep.mubr.bf16.mxu0 0
    %958 = vmatmul.mubr.bf16.gmra.mrb[0].mxu0 %v874
    %v959 = vpop.f32.mrb[0].mxu0
    %v960 = vadd.f32 0.0, %v959
    %v961 = vpop.f32.mrb[0].mxu0
    %v962 = vpop.f32.mrb[0].mxu0
    %v963 = vadd.f32 0.0, %v962
    %v964 = vpop.f32.mrb[0].mxu0
    %965 = vmatprep.mubr.bf16.mxu0 0
    %966 = vmatmul.mubr.bf16.gmra.mrb[0].mxu0 %v877
    %v967 = vpop.f32.mrb[0].mxu0
    %v968 = vadd.f32 0.0, %v967
    %v969 = vpop.f32.mrb[0].mxu0
    %v970 = vpop.f32.mrb[0].mxu0
    %v971 = vadd.f32 0.0, %v970
    %v972 = vpop.f32.mrb[0].mxu0
    %973 = vmatprep.mubr.bf16.mxu0 0
    %974 = vmatmul.mubr.bf16.gmra.mrb[0].mxu0 %v880
    %v975 = vpop.f32.mrb[0].mxu0
    %v976 = vadd.f32 0.0, %v975
    %v977 = vpop.f32.mrb[0].mxu0
    %v978 = vpop.f32.mrb[0].mxu0
    %v979 = vadd.f32 0.0, %v978
    %v980 = vpop.f32.mrb[0].mxu0
    %981 = vdwg.mxu0
    %v982 = vmax.f32 %v920, %v936
    %v983 = vmax.f32 %v923, %v939
    %v984 = vmax.f32 %v928, %v944
    %v985 = vmax.f32 %v931, %v947
    %v986 = vmax.f32 %v982, %v952
    %v987 = vmax.f32 %v983, %v955
    %v988 = vmax.f32 %v984, %v960
    %v989 = vmax.f32 %v985, %v963
    %v990 = vmax.f32 %v986, %v968
    %v991 = vmax.f32 %v987, %v971
    %v992 = vmax.f32 %v988, %v976
    %v993 = vmax.f32 %v989, %v979
    %v994 = vmax.f32 %v990, %v991
    %v995 = vmax.f32 %v992, %v993
    %v996 = vmax.f32 %v994, %v995
    %v997 = vrot.slane %v996, 4
    %v998 = vmax.f32 %v996, %v997
    %v999 = vrot.slane %v998, 2
    %v1000 = vmax.f32 %v998, %v999
    %v1001 = vrot.slane %v1000, 1
    %v1002 = vmax.f32 %v1000, %v1001
    %v1003 = vsub.f32 %v920, %v1002
    %v1004 = vsub.f32 %v923, %v1002
    %v1005 = vsub.f32 %v928, %v1002
    %v1006 = vsub.f32 %v931, %v1002
    %v1007 = vsub.f32 %v936, %v1002
    %v1008 = vsub.f32 %v939, %v1002
    %v1009 = vsub.f32 %v944, %v1002
    %v1010 = vsub.f32 %v947, %v1002
    %v1011 = vsub.f32 %v952, %v1002
    %v1012 = vsub.f32 %v955, %v1002
    %v1013 = vsub.f32 %v960, %v1002
    %v1014 = vsub.f32 %v963, %v1002
    %v1015 = vsub.f32 %v968, %v1002
    %v1016 = vsub.f32 %v971, %v1002
    %v1017 = vsub.f32 %v976, %v1002
    %v1018 = vsub.f32 %v979, %v1002
    %v1019 = vmul.f32 %v1003, 1.442695
    %v1020 = vpow.pop %v1019
    %v1021 = vmul.f32 %v1004, 1.442695
    %v1022 = vpow.pop %v1021
    %v1023 = vmul.f32 %v1005, 1.442695
    %v1024 = vpow.pop %v1023
    %v1025 = vmul.f32 %v1006, 1.442695
    %v1026 = vpow.pop %v1025
    %v1027 = vmul.f32 %v1007, 1.442695
    %v1028 = vpow.pop %v1027
    %v1029 = vmul.f32 %v1008, 1.442695
    %v1030 = vpow.pop %v1029
    %v1031 = vmul.f32 %v1009, 1.442695
    %v1032 = vpow.pop %v1031
    %v1033 = vmul.f32 %v1010, 1.442695
    %v1034 = vpow.pop %v1033
    %v1035 = vmul.f32 %v1011, 1.442695
    %v1036 = vpow.pop %v1035
    %v1037 = vmul.f32 %v1012, 1.442695
    %v1038 = vpow.pop %v1037
    %v1039 = vmul.f32 %v1013, 1.442695
    %v1040 = vpow.pop %v1039
    %v1041 = vmul.f32 %v1014, 1.442695
    %v1042 = vpow.pop %v1041
    %v1043 = vmul.f32 %v1015, 1.442695
    %v1044 = vpow.pop %v1043
    %v1045 = vmul.f32 %v1016, 1.442695
    %v1046 = vpow.pop %v1045
    %v1047 = vmul.f32 %v1017, 1.442695
    %v1048 = vpow.pop %v1047
    %v1049 = vmul.f32 %v1018, 1.442695
    %v1050 = vpow.pop %v1049
    %v1051 = vadd.f32 %v1020, %v1022
    %v1052 = vadd.f32 %v1051, %v1024
    %v1053 = vadd.f32 %v1052, %v1026
    %v1054 = vadd.f32 %v1053, %v1028
    %v1055 = vadd.f32 %v1054, %v1030
    %v1056 = vadd.f32 %v1055, %v1032
    %v1057 = vadd.f32 %v1056, %v1034
    %v1058 = vadd.f32 %v1057, %v1036
    %v1059 = vadd.f32 %v1058, %v1038
    %v1060 = vadd.f32 %v1059, %v1040
    %v1061 = vadd.f32 %v1060, %v1042
    %v1062 = vadd.f32 %v1061, %v1044
    %v1063 = vadd.f32 %v1062, %v1046
    %v1064 = vadd.f32 %v1063, %v1048
    %v1065 = vadd.f32 %v1064, %v1050
    %v1066 = vrot.slane %v1065, 4
    %v1067 = vadd.f32 %v1065, %v1066
    %v1068 = vrot.slane %v1067, 2
    %v1069 = vadd.f32 %v1067, %v1068
    %v1070 = vrot.slane %v1069, 1
    %v1071 = vadd.f32 %v1069, %v1070
    %v1072 = vrcp.pop %v1071
    %v1073 = vmul.f32 %v534, %v1072
    %v1074 = vpack.c.bf16 %v1073, %v1073
    %v1075 = vpack.c.bf16 %v1022, %v1020
    %v1076 = vpack.c.bf16 %v1026, %v1024
    %v1077 = vpack.c.bf16 %v1030, %v1028
    %v1078 = vpack.c.bf16 %v1034, %v1032
    %v1079 = vpack.c.bf16 %v1038, %v1036
    %v1080 = vpack.c.bf16 %v1042, %v1040
    %v1081 = vpack.c.bf16 %v1046, %v1044
    %v1082 = vpack.c.bf16 %v1050, %v1048
    %1083 = vmatprep.subr.bf16.mxu0 0
    %1084 = vmatpush1.bf16.xpose.msra.mxu0 %v1075
    %1085 = vmatprep.subr.bf16.mxu0 0
    %1086 = vmatpush1.bf16.xpose.msra.mxu0 %v1076
    %1087 = vmatprep.subr.bf16.mxu0 0
    %1088 = vmatpush1.bf16.xpose.msra.mxu0 %v1077
    %1089 = vmatprep.subr.bf16.mxu0 0
    %1090 = vmatpush1.bf16.xpose.msra.mxu0 %v1078
    %1091 = vmatprep.subr.bf16.mxu0 0
    %1092 = vmatpush1.bf16.xpose.msra.mxu0 %v1079
    %1093 = vmatprep.subr.bf16.mxu0 0
    %1094 = vmatpush1.bf16.xpose.msra.mxu0 %v1080
    %1095 = vmatprep.subr.bf16.mxu0 0
    %1096 = vmatpush1.bf16.xpose.msra.mxu0 %v1081
    %1097 = vmatprep.subr.bf16.mxu0 0
    %1098 = vmatpush1.bf16.xpose.msra.mxu0 %v1082
    %1099 = vmatprep.subr.bf16.mxu0 0
    %1100 = vmatpush1.bf16.xpose.msra.mxu0 0
    %1101 = vmatprep.subr.bf16.mxu0 0
    %1102 = vmatpush1.bf16.xpose.msra.mxu0 0
    %1103 = vmatprep.subr.bf16.mxu0 0
    %1104 = vmatpush1.bf16.xpose.msra.mxu0 0
    %1105 = vmatprep.subr.bf16.mxu0 0
    %1106 = vmatpush1.bf16.xpose.msra.mxu0 0
    %1107 = vmatprep.subr.bf16.mxu0 0
    %1108 = vmatpush1.bf16.xpose.msra.mxu0 0
    %1109 = vmatprep.subr.bf16.mxu0 0
    %1110 = vmatpush1.bf16.xpose.msra.mxu0 0
    %1111 = vmatprep.subr.bf16.mxu0 0
    %1112 = vmatpush1.bf16.xpose.msra.mxu0 0
    %1113 = vmatprep.subr.bf16.mxu0 0
    %1114 = vmatpush1.bf16.xpose.msra.mxu0 0
    %1115 = vmatprep.mubr.bf16.mxu0 0
    %1116 = vmatmul.mubr.bf16.gmra.mrb[0].mxu0 %v1074
    %v1117 = vpop.f32.mrb[0].mxu0
    %v1118 = vadd.f32 0.0, %v1117
    %v1119 = vpop.f32.mrb[0].mxu0
    %v1120 = vpop.f32.mrb[0].mxu0
    %v1121 = vpop.f32.mrb[0].mxu0
    %1122 = vdwg.mxu0
    %v1123 = vpack.c.bf16 %v1118, %v1118
    %v1124 = vld [vmem:[#allocation7 + $0x40] sm:$0xf]
    %v1125 = vld [vmem:[#allocation7 + $0x44] sm:$0xf]
    %v1126 = vld [vmem:[#allocation7 + $0x48] sm:$0xf]
    %v1127 = vld [vmem:[#allocation7 + $0x4c] sm:$0xf]
    %v1128 = vld [vmem:[#allocation7 + $0x50] sm:$0xf]
    %v1129 = vld [vmem:[#allocation7 + $0x54] sm:$0xf]
    %v1130 = vld [vmem:[#allocation7 + $0x58] sm:$0xf]
    %v1131 = vld [vmem:[#allocation7 + $0x5c] sm:$0xf]
    %v1132 = vld [vmem:[#allocation7 + $0x60] sm:$0xf]
    %v1133 = vld [vmem:[#allocation7 + $0x64] sm:$0xf]
    %v1134 = vld [vmem:[#allocation7 + $0x68] sm:$0xf]
    %v1135 = vld [vmem:[#allocation7 + $0x6c] sm:$0xf]
    %v1136 = vld [vmem:[#allocation7 + $0x70] sm:$0xf]
    %v1137 = vld [vmem:[#allocation7 + $0x74] sm:$0xf]
    %v1138 = vld [vmem:[#allocation7 + $0x78] sm:$0xf]
    %v1139 = vld [vmem:[#allocation7 + $0x7c] sm:$0xf]
    %v1156 = vunpack.c.l.b16 %v1124
    %v1157 = vunpack.c.l.b16 %v1125
    %v1158 = vunpack.c.l.b16 %v1126
    %v1159 = vunpack.c.l.b16 %v1127
    %v1160 = vunpack.c.l.b16 %v1128
    %v1161 = vunpack.c.l.b16 %v1129
    %v1162 = vunpack.c.l.b16 %v1130
    %v1163 = vunpack.c.l.b16 %v1131
    %v1164 = vunpack.c.l.b16 %v1132
    %v1165 = vunpack.c.l.b16 %v1133
    %v1166 = vunpack.c.l.b16 %v1134
    %v1167 = vunpack.c.l.b16 %v1135
    %v1168 = vunpack.c.l.b16 %v1136
    %v1169 = vunpack.c.l.b16 %v1137
    %v1170 = vunpack.c.l.b16 %v1138
    %v1171 = vunpack.c.l.b16 %v1139
    %v1172 = vpack.c.b16 %v1157, %v1156
    %v1173 = vpack.c.b16 %v1159, %v1158
    %v1174 = vpack.c.b16 %v1161, %v1160
    %v1175 = vpack.c.b16 %v1163, %v1162
    %v1176 = vpack.c.b16 %v1165, %v1164
    %v1177 = vpack.c.b16 %v1167, %v1166
    %v1178 = vpack.c.b16 %v1169, %v1168
    %v1179 = vpack.c.b16 %v1171, %v1170
    %1188 = vmatprep.subr.bf16.mxu0 0
    %1189 = vmatpush1.bf16.msra.mxu0 %v1172
    %1190 = vmatprep.subr.bf16.mxu0 0
    %1191 = vmatpush1.bf16.msra.mxu0 %v1173
    %1192 = vmatprep.subr.bf16.mxu0 0
    %1193 = vmatpush1.bf16.msra.mxu0 %v1174
    %1194 = vmatprep.subr.bf16.mxu0 0
    %1195 = vmatpush1.bf16.msra.mxu0 %v1175
    %1196 = vmatprep.subr.bf16.mxu0 0
    %1197 = vmatpush1.bf16.msra.mxu0 %v1176
    %1198 = vmatprep.subr.bf16.mxu0 0
    %1199 = vmatpush1.bf16.msra.mxu0 %v1177
    %1200 = vmatprep.subr.bf16.mxu0 0
    %1201 = vmatpush1.bf16.msra.mxu0 %v1178
    %1202 = vmatprep.subr.bf16.mxu0 0
    %1203 = vmatpush1.bf16.msra.mxu0 %v1179
    %1204 = vmatprep.subr.bf16.mxu0 0
    %1205 = vmatpush1.bf16.msra.mxu0 0
    %1206 = vmatprep.subr.bf16.mxu0 0
    %1207 = vmatpush1.bf16.msra.mxu0 0
    %1208 = vmatprep.subr.bf16.mxu0 0
    %1209 = vmatpush1.bf16.msra.mxu0 0
    %1210 = vmatprep.subr.bf16.mxu0 0
    %1211 = vmatpush1.bf16.msra.mxu0 0
    %1212 = vmatprep.subr.bf16.mxu0 0
    %1213 = vmatpush1.bf16.msra.mxu0 0
    %1214 = vmatprep.subr.bf16.mxu0 0
    %1215 = vmatpush1.bf16.msra.mxu0 0
    %1216 = vmatprep.subr.bf16.mxu0 0
    %1217 = vmatpush1.bf16.msra.mxu0 0
    %1218 = vmatprep.subr.bf16.mxu0 0
    %1219 = vmatpush1.bf16.msra.mxu0 0
    %1220 = vmatprep.mubr.bf16.mxu0 0
    %1221 = vmatmul.mubr.bf16.gmra.mrb[0].mxu0 %v1123
    %v1222 = vpop.f32.mrb[0].mxu0
    %v1223 = vadd.f32 0.0, %v1222
    %v1224 = vpop.f32.mrb[0].mxu0
    %v1225 = vpop.f32.mrb[0].mxu0
    %v1226 = vpop.f32.mrb[0].mxu0
    %1227 = vdwg.mxu0
    %v1244 = vunpack.c.l.b16 %v824
    %v1245 = vunpack.c.l.b16 %v825
    %v1246 = vunpack.c.l.b16 %v826
    %v1247 = vunpack.c.l.b16 %v827
    %v1248 = vunpack.c.l.b16 %v828
    %v1249 = vunpack.c.l.b16 %v829
    %v1250 = vunpack.c.l.b16 %v830
    %v1251 = vunpack.c.l.b16 %v831
    %v1252 = vunpack.c.l.b16 %v832
    %v1253 = vunpack.c.l.b16 %v833
    %v1254 = vunpack.c.l.b16 %v834
    %v1255 = vunpack.c.l.b16 %v835
    %v1256 = vunpack.c.l.b16 %v836
    %v1257 = vunpack.c.l.b16 %v837
    %v1258 = vunpack.c.l.b16 %v838
    %v1259 = vunpack.c.l.b16 %v839
    %v1260 = vpack.c.b16 %v1245, %v1244
    %v1261 = vpack.c.b16 %v1247, %v1246
    %v1262 = vpack.c.b16 %v1249, %v1248
    %v1263 = vpack.c.b16 %v1251, %v1250
    %v1264 = vpack.c.b16 %v1253, %v1252
    %v1265 = vpack.c.b16 %v1255, %v1254
    %v1266 = vpack.c.b16 %v1257, %v1256
    %v1267 = vpack.c.b16 %v1259, %v1258
    %1276 = vmatprep.subr.bf16.mxu0 0
    %1277 = vmatpush1.bf16.msra.mxu0 %v1260
    %1278 = vmatprep.subr.bf16.mxu0 0
    %1279 = vmatpush1.bf16.msra.mxu0 %v1261
    %1280 = vmatprep.subr.bf16.mxu0 0
    %1281 = vmatpush1.bf16.msra.mxu0 %v1262
    %1282 = vmatprep.subr.bf16.mxu0 0
    %1283 = vmatpush1.bf16.msra.mxu0 %v1263
    %1284 = vmatprep.subr.bf16.mxu0 0
    %1285 = vmatpush1.bf16.msra.mxu0 %v1264
    %1286 = vmatprep.subr.bf16.mxu0 0
    %1287 = vmatpush1.bf16.msra.mxu0 %v1265
    %1288 = vmatprep.subr.bf16.mxu0 0
    %1289 = vmatpush1.bf16.msra.mxu0 %v1266
    %1290 = vmatprep.subr.bf16.mxu0 0
    %1291 = vmatpush1.bf16.msra.mxu0 %v1267
    %1292 = vmatprep.subr.bf16.mxu0 0
    %1293 = vmatpush1.bf16.msra.mxu0 0
    %1294 = vmatprep.subr.bf16.mxu0 0
    %1295 = vmatpush1.bf16.msra.mxu0 0
    %1296 = vmatprep.subr.bf16.mxu0 0
    %1297 = vmatpush1.bf16.msra.mxu0 0
    %1298 = vmatprep.subr.bf16.mxu0 0
    %1299 = vmatpush1.bf16.msra.mxu0 0
    %1300 = vmatprep.subr.bf16.mxu0 0
    %1301 = vmatpush1.bf16.msra.mxu0 0
    %1302 = vmatprep.subr.bf16.mxu0 0
    %1303 = vmatpush1.bf16.msra.mxu0 0
    %1304 = vmatprep.subr.bf16.mxu0 0
    %1305 = vmatpush1.bf16.msra.mxu0 0
    %1306 = vmatprep.subr.bf16.mxu0 0
    %1307 = vmatpush1.bf16.msra.mxu0 0
    %1308 = vmatprep.mubr.bf16.mxu0 0
    %1309 = vmatmul.mubr.bf16.gmra.mrb[0].mxu0 %v823
    %v1310 = vpop.f32.mrb[0].mxu0
    %v1311 = vadd.f32 %v1223, %v1310
    %v1312 = vpop.f32.mrb[0].mxu0
    %v1313 = vpop.f32.mrb[0].mxu0
    %v1314 = vpop.f32.mrb[0].mxu0
    %1315 = vdwg.mxu0
    %v1316 = vld [vmem:[%s4] sm:$0x1]
    %v1318 = vlaneseq
    %v1319 = vshrl.u32 %v1318, 7
    %v1320 = vsub.s32 0, %v1319
    %v1321 = vrot.slane %v1316, %v1320
    %v1323 = vadd.f32 %v1311, %v1321
    %v1324 = vld [vmem:[%s5] sm:$0x1]
    %v1325 = vld [vmem:[%s6] sm:$0x1]
    %1326 = vadd.xlane.f32.xlu0 %v1323
    %v1327 = vpop.xlane.xlu0 %1326
    %v1328 = vrcp.pop 128.0
    %v1329 = vmul.f32 %v1327, %v1328
    %v1330 = vsub.f32 %v1323, %v1329
    %v1331 = vmul.f32 %v1330, %v1330
    %1332 = vadd.xlane.f32.xlu0 %v1331
    %v1333 = vpop.xlane.xlu0 %1332
    %v1334 = vmul.f32 %v1333, %v1328
    %v1335 = vadd.f32 %v1334, 1e-05
    %v1336 = vrsqrt.pop %v1335
    %v1337 = vmul.f32 %v1330, %v1336
    %v1339 = vlaneseq
    %v1340 = vshrl.u32 %v1339, 7
    %v1341 = vsub.s32 0, %v1340
    %v1342 = vrot.slane %v1324, %v1341
    %v1344 = vmul.f32 %v1337, %v1342
    %v1346 = vlaneseq
    %v1347 = vshrl.u32 %v1346, 7
    %v1348 = vsub.s32 0, %v1347
    %v1349 = vrot.slane %v1325, %v1348
    %v1351 = vadd.f32 %v1344, %v1349
    %v1352 = vadd.f32 %v1351, %v93
    %v1353 = vpack.c.bf16 %v1352, %v1352
    %v1354 = vld [vmem:[#allocation8] sm:$0xf]
    %v1355 = vld [vmem:[#allocation8 + $0x4] sm:$0xf]
    %v1356 = vld [vmem:[#allocation8 + $0x8] sm:$0xf]
    %v1357 = vld [vmem:[#allocation8 + $0xc] sm:$0xf]
    %v1358 = vld [vmem:[#allocation8 + $0x10] sm:$0xf]
    %v1359 = vld [vmem:[#allocation8 + $0x14] sm:$0xf]
    %v1360 = vld [vmem:[#allocation8 + $0x18] sm:$0xf]
    %v1361 = vld [vmem:[#allocation8 + $0x1c] sm:$0xf]
    %v1362 = vld [vmem:[#allocation8 + $0x20] sm:$0xf]
    %v1363 = vld [vmem:[#allocation8 + $0x24] sm:$0xf]
    %v1364 = vld [vmem:[#allocation8 + $0x28] sm:$0xf]
    %v1365 = vld [vmem:[#allocation8 + $0x2c] sm:$0xf]
    %v1366 = vld [vmem:[#allocation8 + $0x30] sm:$0xf]
    %v1367 = vld [vmem:[#allocation8 + $0x34] sm:$0xf]
    %v1368 = vld [vmem:[#allocation8 + $0x38] sm:$0xf]
    %v1369 = vld [vmem:[#allocation8 + $0x3c] sm:$0xf]
    %v1370 = vld [vmem:[%s8] sm:$0x1]
    %v1372 = vlaneseq
    %v1373 = vshrl.u32 %v1372, 7
    %v1374 = vsub.s32 0, %v1373
    %v1375 = vrot.slane %v1370, %v1374
    %v1393 = vunpack.c.l.b16 %v1354
    %v1394 = vunpack.c.l.b16 %v1355
    %v1395 = vunpack.c.l.b16 %v1356
    %v1396 = vunpack.c.l.b16 %v1357
    %v1397 = vunpack.c.l.b16 %v1358
    %v1398 = vunpack.c.l.b16 %v1359
    %v1399 = vunpack.c.l.b16 %v1360
    %v1400 = vunpack.c.l.b16 %v1361
    %v1401 = vunpack.c.l.b16 %v1362
    %v1402 = vunpack.c.l.b16 %v1363
    %v1403 = vunpack.c.l.b16 %v1364
    %v1404 = vunpack.c.l.b16 %v1365
    %v1405 = vunpack.c.l.b16 %v1366
    %v1406 = vunpack.c.l.b16 %v1367
    %v1407 = vunpack.c.l.b16 %v1368
    %v1408 = vunpack.c.l.b16 %v1369
    %v1409 = vpack.c.b16 %v1394, %v1393
    %v1410 = vpack.c.b16 %v1396, %v1395
    %v1411 = vpack.c.b16 %v1398, %v1397
    %v1412 = vpack.c.b16 %v1400, %v1399
    %v1413 = vpack.c.b16 %v1402, %v1401
    %v1414 = vpack.c.b16 %v1404, %v1403
    %v1415 = vpack.c.b16 %v1406, %v1405
    %v1416 = vpack.c.b16 %v1408, %v1407
    %1425 = vmatprep.subr.bf16.mxu0 0
    %1426 = vmatpush1.bf16.msra.mxu0 %v1409
    %1427 = vmatprep.subr.bf16.mxu0 0
    %1428 = vmatpush1.bf16.msra.mxu0 %v1410
    %1429 = vmatprep.subr.bf16.mxu0 0
    %1430 = vmatpush1.bf16.msra.mxu0 %v1411
    %1431 = vmatprep.subr.bf16.mxu0 0
    %1432 = vmatpush1.bf16.msra.mxu0 %v1412
    %1433 = vmatprep.subr.bf16.mxu0 0
    %1434 = vmatpush1.bf16.msra.mxu0 %v1413
    %1435 = vmatprep.subr.bf16.mxu0 0
    %1436 = vmatpush1.bf16.msra.mxu0 %v1414
    %1437 = vmatprep.subr.bf16.mxu0 0
    %1438 = vmatpush1.bf16.msra.mxu0 %v1415
    %1439 = vmatprep.subr.bf16.mxu0 0
    %1440 = vmatpush1.bf16.msra.mxu0 %v1416
    %1441 = vmatprep.subr.bf16.mxu0 0
    %1442 = vmatpush1.bf16.msra.mxu0 0
    %1443 = vmatprep.subr.bf16.mxu0 0
    %1444 = vmatpush1.bf16.msra.mxu0 0
    %1445 = vmatprep.subr.bf16.mxu0 0
    %1446 = vmatpush1.bf16.msra.mxu0 0
    %1447 = vmatprep.subr.bf16.mxu0 0
    %1448 = vmatpush1.bf16.msra.mxu0 0
    %1449 = vmatprep.subr.bf16.mxu0 0
    %1450 = vmatpush1.bf16.msra.mxu0 0
    %1451 = vmatprep.subr.bf16.mxu0 0
    %1452 = vmatpush1.bf16.msra.mxu0 0
    %1453 = vmatprep.subr.bf16.mxu0 0
    %1454 = vmatpush1.bf16.msra.mxu0 0
    %1455 = vmatprep.subr.bf16.mxu0 0
    %1456 = vmatpush1.bf16.msra.mxu0 0
    %1457 = vmatprep.mubr.bf16.mxu0 0
    %1458 = vmatmul.mubr.bf16.gmra.mrb[0].mxu0 %v1353
    %v1459 = vpop.f32.mrb[0].mxu0
    %v1460 = vadd.f32 %v1375, %v1459
    %v1461 = vpop.f32.mrb[0].mxu0
    %v1462 = vpop.f32.mrb[0].mxu0
    %v1463 = vpop.f32.mrb[0].mxu0
    %1464 = vdwg.mxu0
    %v1465 = vld [vmem:[%s9] sm:$0x1]
    %v1466 = vld [vmem:[%s10] sm:$0x1]
    %1467 = vadd.xlane.f32.xlu0 %v1460
    %v1468 = vpop.xlane.xlu0 %1467
    %v1469 = vmul.f32 %v1468, %v1328
    %v1470 = vsub.f32 %v1460, %v1469
    %v1471 = vmul.f32 %v1470, %v1470
    %1472 = vadd.xlane.f32.xlu0 %v1471
    %v1473 = vpop.xlane.xlu0 %1472
    %v1474 = vmul.f32 %v1473, %v1328
    %v1475 = vadd.f32 %v1474, 1e-05
    %v1476 = vrsqrt.pop %v1475
    %v1477 = vmul.f32 %v1470, %v1476
    %v1479 = vlaneseq
    %v1480 = vshrl.u32 %v1479, 7
    %v1481 = vsub.s32 0, %v1480
    %v1482 = vrot.slane %v1465, %v1481
    %v1484 = vmul.f32 %v1477, %v1482
    %v1486 = vlaneseq
    %v1487 = vshrl.u32 %v1486, 7
    %v1488 = vsub.s32 0, %v1487
    %v1489 = vrot.slane %v1466, %v1488
    %v1491 = vadd.f32 %v1484, %v1489
    %v1492 = vadd.f32 %v1491, %v1352
    %1493 = vst [vmem:[#allocation10] sm:$0xff] %v1492
    // Predicated region
    $region62: #{tpu_custom_call.1} parent=1 // pred_check
      _
    $region63: #{tpu_custom_call.1} parent=1 // pred_check_branch
      %1495 = sbr.rel (0) target = $region65
    $region64: #{tpu_custom_call.1} parent=1 // pred_region
      %s1497 = ssub.s32 128, 128
      %1498 = vsyncadd [#allocation4], %s1497
      %s1500 = sshll.u32 [#allocation10], 4
      %s1501 = int_to_ptr.vmem [resolvable:$true] %s1500
      %1503 = dma.vmem_to_hbm [thread:$0]  %s1501, 128, %s11, [#allocation4]
    $region65: #{tpu_custom_call.1} parent=1 // pred_fallthru
      _
    // Predicated region
    $region66: #{tpu_custom_call.1} parent=1 // pred_check
      _
    $region67: #{tpu_custom_call.1} parent=1 // pred_check_branch
      %1505 = sbr.rel (0) target = $region69
    $region68: #{tpu_custom_call.1} parent=1 // pred_region
      %1506 = dma.done [#allocation4], 128
    $region69: #{tpu_custom_call.1} parent=1 // pred_fallthru
      _
    %1507 = vsyncpa [#allocation3], 1
    %1508 = vsyncpa [#allocation6], 1
    %1509 = vsyncpa [#allocation9], 1
    %1510 = vsyncpa [#allocation4], 1

</llo_original>
